<compile_context>
chip_gen: v6e
topology: v6e:2x2x1
jax: 0.10.0
libtpu: 0.0.40
codegen_flags: <defaults>
</compile_context>

<pallas_src>
import functools

import jax
import jax.numpy as jnp
from jax.experimental import pallas as pl
from jax.experimental.pallas import tpu as pltpu


def _group_knn_kernel(points_ref, new_points_ref, feats_ref, out_ref, *, num_samples):
    # Per-step blocks: points (1,3,N), new_points (1,3,TM), features (1,C,N),
    # out (1, S, 3+C, TM).
    p = points_ref[0].astype(jnp.float32)       # (3, N)
    q = new_points_ref[0].astype(jnp.float32)   # (3, TM)
    f = feats_ref[0].astype(jnp.float32)        # (C, N)
    N = p.shape[1]
    TM = q.shape[1]
    C = f.shape[0]

    # Fused gather table [points; features] and the query residual (zero-padded
    # over the feature channels) -- built once per tile.
    table = jnp.concatenate([p, f], axis=0)                                   # (3+C, N)
    q_pad = jnp.concatenate([q, jnp.zeros((C, TM), jnp.float32)], axis=0)     # (3+C, TM)

    # Squared distances in a single augmented-K matmul (K=5 pads to the MXU's
    # native K anyway):  dist[n, m] = ||p_n||^2 + ||q_m||^2 - 2 p_n . q_m
    pp = jnp.sum(p * p, axis=0, keepdims=True)                                # (1, N)
    qq = jnp.sum(q * q, axis=0, keepdims=True)                                # (1, TM)
    p_aug = jnp.concatenate([p, pp, jnp.ones((1, N), jnp.float32)], axis=0)   # (5, N)
    q_aug = jnp.concatenate([-2.0 * q, jnp.ones((1, TM), jnp.float32), qq],
                            axis=0)                                           # (5, TM)
    dist = jnp.einsum("cn,cm->nm", p_aug, q_aug,
                      preferred_element_type=jnp.float32)                     # (N, TM)

    row = jax.lax.broadcasted_iota(jnp.int32, (N, TM), 0)                     # point index

    # Iterative k-min selection.  Everything stays in the lane-dense (N, TM)
    # orientation: min + smallest-index tie-break along sublanes, then one
    # canonical (3+C, N) @ (N, TM) one-hot gather on the MXU per sample, stored
    # straight into the output block.
    for s in range(num_samples):
        d_min = jnp.min(dist, axis=0, keepdims=True)                          # (1, TM)
        idx = jnp.min(jnp.where(dist == d_min, row, jnp.int32(N)),
                      axis=0, keepdims=True)                                  # (1, TM)
        hit = row == idx                                                      # (N, TM)
        col = jnp.dot(table, hit.astype(jnp.float32),
                      preferred_element_type=jnp.float32)                     # (3+C, TM)
        out_ref[0, s, :, :] = col - q_pad
        dist = jnp.where(hit, jnp.float32(jnp.inf), dist)                     # drop neighbor


def _pick_m_tile(M, N):
    """Largest lane-aligned M tile whose (N, TM) f32 working set (~4 live
    buffers: dist, iota, one-hot, select temp) stays under ~24 MiB, so the
    kernel fits v7x's 64 MiB VMEM while still giving v5e/v6e large tiles."""
    if M % 128 != 0:
        return M
    tile = 128
    for tm in (256, 512):
        if M % tm == 0 and 4 * N * tm * 4 <= 24 * 1024 * 1024:
            tile = tm
    return tile


def group_knn(points, new_points, features, num_samples):
    """Pallas implementation of Group(knn=True).forward."""
    B, _, N = points.shape
    _, _, M = new_points.shape
    C = features.shape[1]
    if num_samples > N:
        raise ValueError("num_samples must be <= number of points")

    tm = _pick_m_tile(M, N)
    grid = (B, M // tm)

    out = pl.pallas_call(
        functools.partial(_group_knn_kernel, num_samples=num_samples),
        out_shape=jax.ShapeDtypeStruct((B, num_samples, 3 + C, M), jnp.float32),
        grid=grid,
        in_specs=[
            pl.BlockSpec((1, 3, N), lambda b, m: (b, 0, 0)),   # resident across m-tiles
            pl.BlockSpec((1, 3, tm), lambda b, m: (b, 0, m)),
            pl.BlockSpec((1, C, N), lambda b, m: (b, 0, 0)),   # resident across m-tiles
        ],
        out_specs=pl.BlockSpec((1, num_samples, 3 + C, tm),
                               lambda b, m: (b, 0, 0, m)),
        compiler_params=pltpu.CompilerParams(
            dimension_semantics=("parallel", "parallel"),
            vmem_limit_bytes=64 * 1024 * 1024,
        ),
    )(points, new_points, features)

    # Back to PyTorch layout (B, 3+C, M, S).
    return jnp.transpose(out, (0, 2, 3, 1))


def group_knn_ref(points, new_points, features, num_samples):
    """Pure-JAX reference mirroring the PyTorch module."""
    diff = points[:, :, :, None] - new_points[:, :, None, :]     # (B, 3, N, M)
    dist = jnp.sum(diff * diff, axis=1)                          # (B, N, M)
    idx = jnp.argsort(dist, axis=1)[:, :num_samples, :]          # (B, S, M)
    ind = jnp.transpose(idx, (0, 2, 1))                          # (B, M, S)

    def gather(arr_b, ind_b):                                    # arr_b (C, N), ind_b (M, S)
        return arr_b[:, ind_b]                                   # (C, M, S)

    grouped_points = jax.vmap(gather)(points, ind)               # (B, 3, M, S)
    grouped_feats = jax.vmap(gather)(features, ind)              # (B, C, M, S)
    grouped_points_new = grouped_points - new_points[:, :, :, None]
    return jnp.concatenate([grouped_points_new, grouped_feats], axis=1)


if __name__ == "__main__":
    B, N, M, C, S = 2, 64, 32, 4, 8   # num_samples = 8; radius unused in knn path

    key = jax.random.PRNGKey(0)
    k1, k2, k3 = jax.random.split(key, 3)
    points = jax.random.normal(k1, (B, 3, N), dtype=jnp.float32)
    new_points = jax.random.normal(k2, (B, 3, M), dtype=jnp.float32)
    features = jax.random.normal(k3, (B, C, N), dtype=jnp.float32)

    out = group_knn(points, new_points, features, S)
    out = jax.block_until_ready(out)

    ref = group_knn_ref(points, new_points, features, S)
    assert out.shape == (B, 3 + C, M, S), out.shape
    assert jnp.allclose(out, ref, atol=1e-4, rtol=1e-4), "mismatch vs reference"

    print("KERNEL_OK")
</pallas_src>

<mosaic_0001>
module attributes {stable_mosaic.version = 11 : i64} {
  func.func @_group_knn_kernel(%arg0: i32, %arg1: i32, %arg2: memref<1x3x64xf32, #tpu.memory_space<vmem>>, %arg3: memref<1x3x32xf32, #tpu.memory_space<vmem>>, %arg4: memref<1x4x64xf32, #tpu.memory_space<vmem>>, %arg5: memref<1x8x7x32xf32, #tpu.memory_space<vmem>>) attributes {dimension_semantics = [#tpu.dimension_semantics<parallel>, #tpu.dimension_semantics<parallel>], iteration_bounds = array<i64: 2, 1>, scalar_prefetch = 0 : i64, scratch_operands = 0 : i64, tpu.core_type = #tpu.core_type<tc>, window_params = [{transform_indices = @transform_0, window_bounds = array<i64: 1, 3, 64>}, {transform_indices = @transform_1, window_bounds = array<i64: 1, 3, 32>}, {transform_indices = @transform_2, window_bounds = array<i64: 1, 4, 64>}, {transform_indices = @transform_3, window_bounds = array<i64: 1, 8, 7, 32>}]} {
    %c0 = arith.constant 0 : index
    %c0_0 = arith.constant 0 : index
    %c0_1 = arith.constant 0 : index
    %0 = vector.load %arg2[%c0, %c0_0, %c0_1] : memref<1x3x64xf32, #tpu.memory_space<vmem>>, vector<1x3x64xf32>
    %1 = vector.shape_cast %0 : vector<1x3x64xf32> to vector<3x64xf32>
    %c0_2 = arith.constant 0 : index
    %c0_3 = arith.constant 0 : index
    %c0_4 = arith.constant 0 : index
    %2 = vector.load %arg3[%c0_2, %c0_3, %c0_4] : memref<1x3x32xf32, #tpu.memory_space<vmem>>, vector<1x3x32xf32>
    %3 = vector.shape_cast %2 : vector<1x3x32xf32> to vector<3x32xf32>
    %c0_5 = arith.constant 0 : index
    %c0_6 = arith.constant 0 : index
    %c0_7 = arith.constant 0 : index
    %4 = vector.load %arg4[%c0_5, %c0_6, %c0_7] : memref<1x4x64xf32, #tpu.memory_space<vmem>>, vector<1x4x64xf32>
    %5 = vector.shape_cast %4 : vector<1x4x64xf32> to vector<4x64xf32>
    %6 = tpu.concatenate %1, %5 in 0 : vector<3x64xf32>, vector<4x64xf32> -> vector<7x64xf32>
    %cst = arith.constant 0.000000e+00 : f32
    %7 = vector.broadcast %cst : f32 to vector<4x32xf32>
    %8 = tpu.concatenate %3, %7 in 0 : vector<3x32xf32>, vector<4x32xf32> -> vector<7x32xf32>
    %9 = arith.mulf %1, %1 : vector<3x64xf32>
    %cst_8 = arith.constant dense<0.000000e+00> : vector<64xf32>
    %10 = vector.multi_reduction <add>, %9, %cst_8 [0] : vector<3x64xf32> to vector<64xf32>
    %11 = vector.shape_cast %10 : vector<64xf32> to vector<1x64xf32>
    %12 = arith.mulf %3, %3 : vector<3x32xf32>
    %cst_9 = arith.constant dense<0.000000e+00> : vector<32xf32>
    %13 = vector.multi_reduction <add>, %12, %cst_9 [0] : vector<3x32xf32> to vector<32xf32>
    %14 = vector.shape_cast %13 : vector<32xf32> to vector<1x32xf32>
    %cst_10 = arith.constant 1.000000e+00 : f32
    %15 = vector.broadcast %cst_10 : f32 to vector<1x64xf32>
    %16 = tpu.concatenate %1, %11, %15 in 0 : vector<3x64xf32>, vector<1x64xf32>, vector<1x64xf32> -> vector<5x64xf32>
    %cst_11 = arith.constant -2.000000e+00 : f32
    %17 = vector.broadcast %cst_11 : f32 to vector<3x32xf32>
    %18 = arith.mulf %17, %3 : vector<3x32xf32>
    %cst_12 = arith.constant 1.000000e+00 : f32
    %19 = vector.broadcast %cst_12 : f32 to vector<1x32xf32>
    %20 = tpu.concatenate %18, %19, %14 in 0 : vector<3x32xf32>, vector<1x32xf32>, vector<1x32xf32> -> vector<5x32xf32>
    "tpu.trace_start"() <{level = 10 : i32, message = "cn,cm->nm"}> : () -> ()
    %cst_13 = arith.constant dense<0.000000e+00> : vector<64x32xf32>
    %21 = tpu.matmul %16, %20, %cst_13 {dimension_numbers = #tpu.dot_dimension_numbers<[0], [0], [1], [1], [0, 1, 1, 1], [], []>} : vector<5x64xf32>, vector<5x32xf32>, vector<64x32xf32> -> vector<64x32xf32>
    "tpu.trace_stop"() : () -> ()
    %22 = tpu.iota {dimensions = array<i32: 0>} : vector<64x32xi32>
    %cst_14 = arith.constant dense<0x7F800000> : vector<32xf32>
    %23 = vector.multi_reduction <minimumf>, %21, %cst_14 [0] : vector<64x32xf32> to vector<32xf32>
    %24 = vector.shape_cast %23 : vector<32xf32> to vector<1x32xf32>
    %25 = vector.broadcast %24 : vector<1x32xf32> to vector<64x32xf32>
    %26 = arith.cmpf oeq, %21, %25 : vector<64x32xf32>
    %c64_i32 = arith.constant 64 : i32
    %27 = vector.broadcast %c64_i32 : i32 to vector<64x32xi32>
    %28 = arith.select %26, %22, %27 : vector<64x32xi1>, vector<64x32xi32>
    %cst_15 = arith.constant dense<2147483647> : vector<32xi32>
    %29 = vector.multi_reduction <minsi>, %28, %cst_15 [0] : vector<64x32xi32> to vector<32xi32>
    %30 = vector.shape_cast %29 : vector<32xi32> to vector<1x32xi32>
    %31 = vector.broadcast %30 : vector<1x32xi32> to vector<64x32xi32>
    %32 = arith.cmpi eq, %22, %31 : vector<64x32xi32>
    %33 = arith.extui %32 : vector<64x32xi1> to vector<64x32xi32>
    %34 = arith.sitofp %33 : vector<64x32xi32> to vector<64x32xf32>
    %cst_16 = arith.constant dense<0.000000e+00> : vector<7x32xf32>
    %35 = tpu.matmul %6, %34, %cst_16 {dimension_numbers = #tpu.dot_dimension_numbers<[1], [0], [0], [1], [0, 0, 1, 1], [], []>} : vector<7x64xf32>, vector<64x32xf32>, vector<7x32xf32> -> vector<7x32xf32>
    %36 = arith.subf %35, %8 : vector<7x32xf32>
    %c0_17 = arith.constant 0 : index
    %c0_18 = arith.constant 0 : index
    %c0_19 = arith.constant 0 : index
    %c0_20 = arith.constant 0 : index
    %37 = vector.load %arg5[%c0_17, %c0_18, %c0_19, %c0_20] : memref<1x8x7x32xf32, #tpu.memory_space<vmem>>, vector<1x1x7x32xf32>
    %38 = vector.shape_cast %37 : vector<1x1x7x32xf32> to vector<7x32xf32>
    %39 = vector.shape_cast %36 : vector<7x32xf32> to vector<1x1x7x32xf32>
    tpu.vector_store %arg5[%c0_17, %c0_18, %c0_19, %c0_20], %39 {strides = array<i32>} : memref<1x8x7x32xf32, #tpu.memory_space<vmem>>, vector<1x1x7x32xf32>,
    %cst_21 = arith.constant 0x7F800000 : f32
    %40 = vector.broadcast %cst_21 : f32 to vector<64x32xf32>
    %41 = arith.select %32, %40, %21 : vector<64x32xi1>, vector<64x32xf32>
    %cst_22 = arith.constant dense<0x7F800000> : vector<32xf32>
    %42 = vector.multi_reduction <minimumf>, %41, %cst_22 [0] : vector<64x32xf32> to vector<32xf32>
    %43 = vector.shape_cast %42 : vector<32xf32> to vector<1x32xf32>
    %44 = vector.broadcast %43 : vector<1x32xf32> to vector<64x32xf32>
    %45 = arith.cmpf oeq, %41, %44 : vector<64x32xf32>
    %c64_i32_23 = arith.constant 64 : i32
    %46 = vector.broadcast %c64_i32_23 : i32 to vector<64x32xi32>
    %47 = arith.select %45, %22, %46 : vector<64x32xi1>, vector<64x32xi32>
    %cst_24 = arith.constant dense<2147483647> : vector<32xi32>
    %48 = vector.multi_reduction <minsi>, %47, %cst_24 [0] : vector<64x32xi32> to vector<32xi32>
    %49 = vector.shape_cast %48 : vector<32xi32> to vector<1x32xi32>
    %50 = vector.broadcast %49 : vector<1x32xi32> to vector<64x32xi32>
    %51 = arith.cmpi eq, %22, %50 : vector<64x32xi32>
    %52 = arith.extui %51 : vector<64x32xi1> to vector<64x32xi32>
    %53 = arith.sitofp %52 : vector<64x32xi32> to vector<64x32xf32>
    %cst_25 = arith.constant dense<0.000000e+00> : vector<7x32xf32>
    %54 = tpu.matmul %6, %53, %cst_25 {dimension_numbers = #tpu.dot_dimension_numbers<[1], [0], [0], [1], [0, 0, 1, 1], [], []>} : vector<7x64xf32>, vector<64x32xf32>, vector<7x32xf32> -> vector<7x32xf32>
    %55 = arith.subf %54, %8 : vector<7x32xf32>
    %c0_26 = arith.constant 0 : index
    %c1 = arith.constant 1 : index
    %c0_27 = arith.constant 0 : index
    %c0_28 = arith.constant 0 : index
    %56 = vector.load %arg5[%c0_26, %c1, %c0_27, %c0_28] : memref<1x8x7x32xf32, #tpu.memory_space<vmem>>, vector<1x1x7x32xf32>
    %57 = vector.shape_cast %56 : vector<1x1x7x32xf32> to vector<7x32xf32>
    %58 = vector.shape_cast %55 : vector<7x32xf32> to vector<1x1x7x32xf32>
    tpu.vector_store %arg5[%c0_26, %c1, %c0_27, %c0_28], %58 {strides = array<i32>} : memref<1x8x7x32xf32, #tpu.memory_space<vmem>>, vector<1x1x7x32xf32>,
    %cst_29 = arith.constant 0x7F800000 : f32
    %59 = vector.broadcast %cst_29 : f32 to vector<64x32xf32>
    %60 = arith.select %51, %59, %41 : vector<64x32xi1>, vector<64x32xf32>
    %cst_30 = arith.constant dense<0x7F800000> : vector<32xf32>
    %61 = vector.multi_reduction <minimumf>, %60, %cst_30 [0] : vector<64x32xf32> to vector<32xf32>
    %62 = vector.shape_cast %61 : vector<32xf32> to vector<1x32xf32>
    %63 = vector.broadcast %62 : vector<1x32xf32> to vector<64x32xf32>
    %64 = arith.cmpf oeq, %60, %63 : vector<64x32xf32>
    %c64_i32_31 = arith.constant 64 : i32
    %65 = vector.broadcast %c64_i32_31 : i32 to vector<64x32xi32>
    %66 = arith.select %64, %22, %65 : vector<64x32xi1>, vector<64x32xi32>
    %cst_32 = arith.constant dense<2147483647> : vector<32xi32>
    %67 = vector.multi_reduction <minsi>, %66, %cst_32 [0] : vector<64x32xi32> to vector<32xi32>
    %68 = vector.shape_cast %67 : vector<32xi32> to vector<1x32xi32>
    %69 = vector.broadcast %68 : vector<1x32xi32> to vector<64x32xi32>
    %70 = arith.cmpi eq, %22, %69 : vector<64x32xi32>
    %71 = arith.extui %70 : vector<64x32xi1> to vector<64x32xi32>
    %72 = arith.sitofp %71 : vector<64x32xi32> to vector<64x32xf32>
    %cst_33 = arith.constant dense<0.000000e+00> : vector<7x32xf32>
    %73 = tpu.matmul %6, %72, %cst_33 {dimension_numbers = #tpu.dot_dimension_numbers<[1], [0], [0], [1], [0, 0, 1, 1], [], []>} : vector<7x64xf32>, vector<64x32xf32>, vector<7x32xf32> -> vector<7x32xf32>
    %74 = arith.subf %73, %8 : vector<7x32xf32>
    %c0_34 = arith.constant 0 : index
    %c2 = arith.constant 2 : index
    %c0_35 = arith.constant 0 : index
    %c0_36 = arith.constant 0 : index
    %75 = vector.load %arg5[%c0_34, %c2, %c0_35, %c0_36] : memref<1x8x7x32xf32, #tpu.memory_space<vmem>>, vector<1x1x7x32xf32>
    %76 = vector.shape_cast %75 : vector<1x1x7x32xf32> to vector<7x32xf32>
    %77 = vector.shape_cast %74 : vector<7x32xf32> to vector<1x1x7x32xf32>
    tpu.vector_store %arg5[%c0_34, %c2, %c0_35, %c0_36], %77 {strides = array<i32>} : memref<1x8x7x32xf32, #tpu.memory_space<vmem>>, vector<1x1x7x32xf32>,
    %cst_37 = arith.constant 0x7F800000 : f32
    %78 = vector.broadcast %cst_37 : f32 to vector<64x32xf32>
    %79 = arith.select %70, %78, %60 : vector<64x32xi1>, vector<64x32xf32>
    %cst_38 = arith.constant dense<0x7F800000> : vector<32xf32>
    %80 = vector.multi_reduction <minimumf>, %79, %cst_38 [0] : vector<64x32xf32> to vector<32xf32>
    %81 = vector.shape_cast %80 : vector<32xf32> to vector<1x32xf32>
    %82 = vector.broadcast %81 : vector<1x32xf32> to vector<64x32xf32>
    %83 = arith.cmpf oeq, %79, %82 : vector<64x32xf32>
    %c64_i32_39 = arith.constant 64 : i32
    %84 = vector.broadcast %c64_i32_39 : i32 to vector<64x32xi32>
    %85 = arith.select %83, %22, %84 : vector<64x32xi1>, vector<64x32xi32>
    %cst_40 = arith.constant dense<2147483647> : vector<32xi32>
    %86 = vector.multi_reduction <minsi>, %85, %cst_40 [0] : vector<64x32xi32> to vector<32xi32>
    %87 = vector.shape_cast %86 : vector<32xi32> to vector<1x32xi32>
    %88 = vector.broadcast %87 : vector<1x32xi32> to vector<64x32xi32>
    %89 = arith.cmpi eq, %22, %88 : vector<64x32xi32>
    %90 = arith.extui %89 : vector<64x32xi1> to vector<64x32xi32>
    %91 = arith.sitofp %90 : vector<64x32xi32> to vector<64x32xf32>
    %cst_41 = arith.constant dense<0.000000e+00> : vector<7x32xf32>
    %92 = tpu.matmul %6, %91, %cst_41 {dimension_numbers = #tpu.dot_dimension_numbers<[1], [0], [0], [1], [0, 0, 1, 1], [], []>} : vector<7x64xf32>, vector<64x32xf32>, vector<7x32xf32> -> vector<7x32xf32>
    %93 = arith.subf %92, %8 : vector<7x32xf32>
    %c0_42 = arith.constant 0 : index
    %c3 = arith.constant 3 : index
    %c0_43 = arith.constant 0 : index
    %c0_44 = arith.constant 0 : index
    %94 = vector.load %arg5[%c0_42, %c3, %c0_43, %c0_44] : memref<1x8x7x32xf32, #tpu.memory_space<vmem>>, vector<1x1x7x32xf32>
    %95 = vector.shape_cast %94 : vector<1x1x7x32xf32> to vector<7x32xf32>
    %96 = vector.shape_cast %93 : vector<7x32xf32> to vector<1x1x7x32xf32>
    tpu.vector_store %arg5[%c0_42, %c3, %c0_43, %c0_44], %96 {strides = array<i32>} : memref<1x8x7x32xf32, #tpu.memory_space<vmem>>, vector<1x1x7x32xf32>,
    %cst_45 = arith.constant 0x7F800000 : f32
    %97 = vector.broadcast %cst_45 : f32 to vector<64x32xf32>
    %98 = arith.select %89, %97, %79 : vector<64x32xi1>, vector<64x32xf32>
    %cst_46 = arith.constant dense<0x7F800000> : vector<32xf32>
    %99 = vector.multi_reduction <minimumf>, %98, %cst_46 [0] : vector<64x32xf32> to vector<32xf32>
    %100 = vector.shape_cast %99 : vector<32xf32> to vector<1x32xf32>
    %101 = vector.broadcast %100 : vector<1x32xf32> to vector<64x32xf32>
    %102 = arith.cmpf oeq, %98, %101 : vector<64x32xf32>
    %c64_i32_47 = arith.constant 64 : i32
    %103 = vector.broadcast %c64_i32_47 : i32 to vector<64x32xi32>
    %104 = arith.select %102, %22, %103 : vector<64x32xi1>, vector<64x32xi32>
    %cst_48 = arith.constant dense<2147483647> : vector<32xi32>
    %105 = vector.multi_reduction <minsi>, %104, %cst_48 [0] : vector<64x32xi32> to vector<32xi32>
    %106 = vector.shape_cast %105 : vector<32xi32> to vector<1x32xi32>
    %107 = vector.broadcast %106 : vector<1x32xi32> to vector<64x32xi32>
    %108 = arith.cmpi eq, %22, %107 : vector<64x32xi32>
    %109 = arith.extui %108 : vector<64x32xi1> to vector<64x32xi32>
    %110 = arith.sitofp %109 : vector<64x32xi32> to vector<64x32xf32>
    %cst_49 = arith.constant dense<0.000000e+00> : vector<7x32xf32>
    %111 = tpu.matmul %6, %110, %cst_49 {dimension_numbers = #tpu.dot_dimension_numbers<[1], [0], [0], [1], [0, 0, 1, 1], [], []>} : vector<7x64xf32>, vector<64x32xf32>, vector<7x32xf32> -> vector<7x32xf32>
    %112 = arith.subf %111, %8 : vector<7x32xf32>
    %c0_50 = arith.constant 0 : index
    %c4 = arith.constant 4 : index
    %c0_51 = arith.constant 0 : index
    %c0_52 = arith.constant 0 : index
    %113 = vector.load %arg5[%c0_50, %c4, %c0_51, %c0_52] : memref<1x8x7x32xf32, #tpu.memory_space<vmem>>, vector<1x1x7x32xf32>
    %114 = vector.shape_cast %113 : vector<1x1x7x32xf32> to vector<7x32xf32>
    %115 = vector.shape_cast %112 : vector<7x32xf32> to vector<1x1x7x32xf32>
    tpu.vector_store %arg5[%c0_50, %c4, %c0_51, %c0_52], %115 {strides = array<i32>} : memref<1x8x7x32xf32, #tpu.memory_space<vmem>>, vector<1x1x7x32xf32>,
    %cst_53 = arith.constant 0x7F800000 : f32
    %116 = vector.broadcast %cst_53 : f32 to vector<64x32xf32>
    %117 = arith.select %108, %116, %98 : vector<64x32xi1>, vector<64x32xf32>
    %cst_54 = arith.constant dense<0x7F800000> : vector<32xf32>
    %118 = vector.multi_reduction <minimumf>, %117, %cst_54 [0] : vector<64x32xf32> to vector<32xf32>
    %119 = vector.shape_cast %118 : vector<32xf32> to vector<1x32xf32>
    %120 = vector.broadcast %119 : vector<1x32xf32> to vector<64x32xf32>
    %121 = arith.cmpf oeq, %117, %120 : vector<64x32xf32>
    %c64_i32_55 = arith.constant 64 : i32
    %122 = vector.broadcast %c64_i32_55 : i32 to vector<64x32xi32>
    %123 = arith.select %121, %22, %122 : vector<64x32xi1>, vector<64x32xi32>
    %cst_56 = arith.constant dense<2147483647> : vector<32xi32>
    %124 = vector.multi_reduction <minsi>, %123, %cst_56 [0] : vector<64x32xi32> to vector<32xi32>
    %125 = vector.shape_cast %124 : vector<32xi32> to vector<1x32xi32>
    %126 = vector.broadcast %125 : vector<1x32xi32> to vector<64x32xi32>
    %127 = arith.cmpi eq, %22, %126 : vector<64x32xi32>
    %128 = arith.extui %127 : vector<64x32xi1> to vector<64x32xi32>
    %129 = arith.sitofp %128 : vector<64x32xi32> to vector<64x32xf32>
    %cst_57 = arith.constant dense<0.000000e+00> : vector<7x32xf32>
    %130 = tpu.matmul %6, %129, %cst_57 {dimension_numbers = #tpu.dot_dimension_numbers<[1], [0], [0], [1], [0, 0, 1, 1], [], []>} : vector<7x64xf32>, vector<64x32xf32>, vector<7x32xf32> -> vector<7x32xf32>
    %131 = arith.subf %130, %8 : vector<7x32xf32>
    %c0_58 = arith.constant 0 : index
    %c5 = arith.constant 5 : index
    %c0_59 = arith.constant 0 : index
    %c0_60 = arith.constant 0 : index
    %132 = vector.load %arg5[%c0_58, %c5, %c0_59, %c0_60] : memref<1x8x7x32xf32, #tpu.memory_space<vmem>>, vector<1x1x7x32xf32>
    %133 = vector.shape_cast %132 : vector<1x1x7x32xf32> to vector<7x32xf32>
    %134 = vector.shape_cast %131 : vector<7x32xf32> to vector<1x1x7x32xf32>
    tpu.vector_store %arg5[%c0_58, %c5, %c0_59, %c0_60], %134 {strides = array<i32>} : memref<1x8x7x32xf32, #tpu.memory_space<vmem>>, vector<1x1x7x32xf32>,
    %cst_61 = arith.constant 0x7F800000 : f32
    %135 = vector.broadcast %cst_61 : f32 to vector<64x32xf32>
    %136 = arith.select %127, %135, %117 : vector<64x32xi1>, vector<64x32xf32>
    %cst_62 = arith.constant dense<0x7F800000> : vector<32xf32>
    %137 = vector.multi_reduction <minimumf>, %136, %cst_62 [0] : vector<64x32xf32> to vector<32xf32>
    %138 = vector.shape_cast %137 : vector<32xf32> to vector<1x32xf32>
    %139 = vector.broadcast %138 : vector<1x32xf32> to vector<64x32xf32>
    %140 = arith.cmpf oeq, %136, %139 : vector<64x32xf32>
    %c64_i32_63 = arith.constant 64 : i32
    %141 = vector.broadcast %c64_i32_63 : i32 to vector<64x32xi32>
    %142 = arith.select %140, %22, %141 : vector<64x32xi1>, vector<64x32xi32>
    %cst_64 = arith.constant dense<2147483647> : vector<32xi32>
    %143 = vector.multi_reduction <minsi>, %142, %cst_64 [0] : vector<64x32xi32> to vector<32xi32>
    %144 = vector.shape_cast %143 : vector<32xi32> to vector<1x32xi32>
    %145 = vector.broadcast %144 : vector<1x32xi32> to vector<64x32xi32>
    %146 = arith.cmpi eq, %22, %145 : vector<64x32xi32>
    %147 = arith.extui %146 : vector<64x32xi1> to vector<64x32xi32>
    %148 = arith.sitofp %147 : vector<64x32xi32> to vector<64x32xf32>
    %cst_65 = arith.constant dense<0.000000e+00> : vector<7x32xf32>
    %149 = tpu.matmul %6, %148, %cst_65 {dimension_numbers = #tpu.dot_dimension_numbers<[1], [0], [0], [1], [0, 0, 1, 1], [], []>} : vector<7x64xf32>, vector<64x32xf32>, vector<7x32xf32> -> vector<7x32xf32>
    %150 = arith.subf %149, %8 : vector<7x32xf32>
    %c0_66 = arith.constant 0 : index
    %c6 = arith.constant 6 : index
    %c0_67 = arith.constant 0 : index
    %c0_68 = arith.constant 0 : index
    %151 = vector.load %arg5[%c0_66, %c6, %c0_67, %c0_68] : memref<1x8x7x32xf32, #tpu.memory_space<vmem>>, vector<1x1x7x32xf32>
    %152 = vector.shape_cast %151 : vector<1x1x7x32xf32> to vector<7x32xf32>
    %153 = vector.shape_cast %150 : vector<7x32xf32> to vector<1x1x7x32xf32>
    tpu.vector_store %arg5[%c0_66, %c6, %c0_67, %c0_68], %153 {strides = array<i32>} : memref<1x8x7x32xf32, #tpu.memory_space<vmem>>, vector<1x1x7x32xf32>,
    %cst_69 = arith.constant 0x7F800000 : f32
    %154 = vector.broadcast %cst_69 : f32 to vector<64x32xf32>
    %155 = arith.select %146, %154, %136 : vector<64x32xi1>, vector<64x32xf32>
    %cst_70 = arith.constant dense<0x7F800000> : vector<32xf32>
    %156 = vector.multi_reduction <minimumf>, %155, %cst_70 [0] : vector<64x32xf32> to vector<32xf32>
    %157 = vector.shape_cast %156 : vector<32xf32> to vector<1x32xf32>
    %158 = vector.broadcast %157 : vector<1x32xf32> to vector<64x32xf32>
    %159 = arith.cmpf oeq, %155, %158 : vector<64x32xf32>
    %c64_i32_71 = arith.constant 64 : i32
    %160 = vector.broadcast %c64_i32_71 : i32 to vector<64x32xi32>
    %161 = arith.select %159, %22, %160 : vector<64x32xi1>, vector<64x32xi32>
    %cst_72 = arith.constant dense<2147483647> : vector<32xi32>
    %162 = vector.multi_reduction <minsi>, %161, %cst_72 [0] : vector<64x32xi32> to vector<32xi32>
    %163 = vector.shape_cast %162 : vector<32xi32> to vector<1x32xi32>
    %164 = vector.broadcast %163 : vector<1x32xi32> to vector<64x32xi32>
    %165 = arith.cmpi eq, %22, %164 : vector<64x32xi32>
    %166 = arith.extui %165 : vector<64x32xi1> to vector<64x32xi32>
    %167 = arith.sitofp %166 : vector<64x32xi32> to vector<64x32xf32>
    %cst_73 = arith.constant dense<0.000000e+00> : vector<7x32xf32>
    %168 = tpu.matmul %6, %167, %cst_73 {dimension_numbers = #tpu.dot_dimension_numbers<[1], [0], [0], [1], [0, 0, 1, 1], [], []>} : vector<7x64xf32>, vector<64x32xf32>, vector<7x32xf32> -> vector<7x32xf32>
    %169 = arith.subf %168, %8 : vector<7x32xf32>
    %c0_74 = arith.constant 0 : index
    %c7 = arith.constant 7 : index
    %c0_75 = arith.constant 0 : index
    %c0_76 = arith.constant 0 : index
    %170 = vector.load %arg5[%c0_74, %c7, %c0_75, %c0_76] : memref<1x8x7x32xf32, #tpu.memory_space<vmem>>, vector<1x1x7x32xf32>
    %171 = vector.shape_cast %170 : vector<1x1x7x32xf32> to vector<7x32xf32>
    %172 = vector.shape_cast %169 : vector<7x32xf32> to vector<1x1x7x32xf32>
    tpu.vector_store %arg5[%c0_74, %c7, %c0_75, %c0_76], %172 {strides = array<i32>} : memref<1x8x7x32xf32, #tpu.memory_space<vmem>>, vector<1x1x7x32xf32>,
    return
  }
  func.func @transform_0(%arg0: i32, %arg1: i32) -> (i32, i32, i32) {
    %c0_i32 = arith.constant 0 : i32
    %c0_i32_0 = arith.constant 0 : i32
    %c0_i32_1 = arith.constant 0 : i32
    return %arg0, %c0_i32, %c0_i32_0 : i32, i32, i32
  }
  func.func @transform_1(%arg0: i32, %arg1: i32) -> (i32, i32, i32) {
    %c0_i32 = arith.constant 0 : i32
    %c0_i32_0 = arith.constant 0 : i32
    return %arg0, %c0_i32, %arg1 : i32, i32, i32
  }
  func.func @transform_2(%arg0: i32, %arg1: i32) -> (i32, i32, i32) {
    %c0_i32 = arith.constant 0 : i32
    %c0_i32_0 = arith.constant 0 : i32
    %c0_i32_1 = arith.constant 0 : i32
    return %arg0, %c0_i32, %c0_i32_0 : i32, i32, i32
  }
  func.func @transform_3(%arg0: i32, %arg1: i32) -> (i32, i32, i32, i32) {
    %c0_i32 = arith.constant 0 : i32
    %c0_i32_0 = arith.constant 0 : i32
    %c0_i32_1 = arith.constant 0 : i32
    return %arg0, %c0_i32, %c0_i32_0, %arg1 : i32, i32, i32, i32
  }
}

</mosaic_0001>

<llo_original>
// kernel: tpu_custom_call.1
$region0: #{tpu_custom_call.1}
  #allocation0 [shape = 'u32[]', space=smem, size = 0x4, offset = 0x4, fixed_abs, tag = 'smem constant byte address 0x4 - core index']
  #allocation1 [shape = 'u32[144,128]{1,0:T(1,128)}', space=vmem, size = 0x12000, scoped, tag = 'internal scratch']
  %s0 = inlined_call_operand.vmem [shape: f32[2,3,64], index: 0, kind: input, shape index: {}]
  %s1 = inlined_call_operand.vmem [shape: f32[2,3,32], index: 1, kind: input, shape index: {}]
  %s2 = inlined_call_operand.vmem [shape: f32[2,4,64], index: 2, kind: input, shape index: {}]
  %s3 = inlined_call_operand.vmem [shape: f32[2,8,7,32], index: 3, kind: output, shape index: {}]
  %s4 = sld [smem:[#allocation0]]
  $region45: #{tpu_custom_call.1} parent=0
    _
  %s6 = ssub.s32 1, %s4
  %s7 = scalar_select 0, %s6, %s4
  loop: start=0, step=1, limit=4
  $region2: #{tpu_custom_call.1} parent=0 // loop_pre_header
    _
  $region3: #{tpu_custom_call.1} parent=0 // loop_header
    %s9 = sphi 0, %s13
    %p10 = scmp.ge.s32.totalorder %s9, 4
    %s16 = sphi 0, %s28
    %s17 = sphi 0, %s24
    %s18 = sphi 0, %s16
    %s19 = sphi 0, %s17
    %s20 = sphi 0, %s18
    %s21 = sphi 0, %s19
    %s31 = sphi 0, %s33
    %s34 = sphi 0, %s31
    %s35 = sphi 0, %s34
    %s51 = sphi 0, %s35
    %s59 = sphi 0, %s61
    %s62 = sphi 0, %s59
    %s63 = sphi 0, %s62
    %s79 = sphi 0, %s63
    %s85 = sphi 0, %s87
    %s88 = sphi 0, %s85
    %s89 = sphi 0, %s88
    %s105 = sphi 0, %s89
    %s113 = sphi 0, %s115
    %s116 = sphi 0, %s113
    %s117 = sphi 0, %s116
    %s133 = sphi 0, %s117
  $region4: #{tpu_custom_call.1} parent=0 // loop_header_branch
    %12 = sbr.rel (%p10) target = $region8
  $region5: #{tpu_custom_call.1} parent=0 // loop_body
    %s14 = ssub.s32 %s9, 1
    %s15 = ssub.s32 %s9, 2
    %s22 = sadd.s32 1, %s17
    %p23 = scmp.ge.s32.totalorder %s22, 1
    %s24 = scalar_select %p23, 0, %s22
    %s25 = sadd.s32 1, %s16
    %s26 = scalar_select %p23, %s25, %s16
    %p27 = scmp.ge.s32.totalorder %s26, 2
    %s28 = scalar_select %p27, 0, %s26
    %s29 = ssub.s32 %s16, %s28
    %p30 = scmp.eq.s32.totalorder %s29, 0
    %s32 = sadd.s32 %s31, 1
    %s33 = scalar_select %p30, %s31, %s32
    %p36 = pneg %p30
    %p37 = scmp.eq.s32.totalorder %s9, 1
    %p38 = por %p36, %p37
    %p39 = scmp.ne.s32.totalorder %s31, %s34
    %p40 = scmp.eq.s32.totalorder %s9, 0
    %p41 = por %p39, %p40
    %p42 = scmp.ne.s32.totalorder %s31, %s34
    %p43 = scmp.eq.s32.totalorder %s14, 1
    %p44 = por %p42, %p43
    %p45 = scmp.ne.s32.totalorder %s34, %s35
    %p46 = scmp.eq.s32.totalorder %s14, 0
    %p47 = por %p45, %p46
    %p48 = scmp.ne.s32.totalorder %s34, %s35
    %p49 = scmp.eq.s32.totalorder %s15, 1
    %p50 = por %p48, %p49
    %p52 = scmp.ne.s32.totalorder %s35, %s51
    %p53 = scmp.eq.s32.totalorder %s15, 0
    %p54 = por %p52, %p53
    %s55 = ssub.s32 %s16, %s28
    %s56 = ssub.s32 %s17, %s24
    %s57 = sor.u32 %s55, %s56
    %p58 = scmp.eq.s32.totalorder %s57, 0
    %s60 = sadd.s32 %s59, 1
    %s61 = scalar_select %p58, %s59, %s60
    %p64 = pneg %p58
    %p65 = scmp.eq.s32.totalorder %s9, 1
    %p66 = por %p64, %p65
    %p67 = scmp.ne.s32.totalorder %s59, %s62
    %p68 = scmp.eq.s32.totalorder %s9, 0
    %p69 = por %p67, %p68
    %p70 = scmp.ne.s32.totalorder %s59, %s62
    %p71 = scmp.eq.s32.totalorder %s14, 1
    %p72 = por %p70, %p71
    %p73 = scmp.ne.s32.totalorder %s62, %s63
    %p74 = scmp.eq.s32.totalorder %s14, 0
    %p75 = por %p73, %p74
    %p76 = scmp.ne.s32.totalorder %s62, %s63
    %p77 = scmp.eq.s32.totalorder %s15, 1
    %p78 = por %p76, %p77
    %p80 = scmp.ne.s32.totalorder %s63, %s79
    %p81 = scmp.eq.s32.totalorder %s15, 0
    %p82 = por %p80, %p81
    %s83 = ssub.s32 %s16, %s28
    %p84 = scmp.eq.s32.totalorder %s83, 0
    %s86 = sadd.s32 %s85, 1
    %s87 = scalar_select %p84, %s85, %s86
    %p90 = pneg %p84
    %p91 = scmp.eq.s32.totalorder %s9, 1
    %p92 = por %p90, %p91
    %p93 = scmp.ne.s32.totalorder %s85, %s88
    %p94 = scmp.eq.s32.totalorder %s9, 0
    %p95 = por %p93, %p94
    %p96 = scmp.ne.s32.totalorder %s85, %s88
    %p97 = scmp.eq.s32.totalorder %s14, 1
    %p98 = por %p96, %p97
    %p99 = scmp.ne.s32.totalorder %s88, %s89
    %p100 = scmp.eq.s32.totalorder %s14, 0
    %p101 = por %p99, %p100
    %p102 = scmp.ne.s32.totalorder %s88, %s89
    %p103 = scmp.eq.s32.totalorder %s15, 1
    %p104 = por %p102, %p103
    %p106 = scmp.ne.s32.totalorder %s89, %s105
    %p107 = scmp.eq.s32.totalorder %s15, 0
    %p108 = por %p106, %p107
    %s109 = ssub.s32 %s16, %s28
    %s110 = ssub.s32 %s17, %s24
    %s111 = sor.u32 %s109, %s110
    %p112 = scmp.eq.s32.totalorder %s111, 0
    %s114 = sadd.s32 %s113, 1
    %s115 = scalar_select %p112, %s113, %s114
    %p118 = pneg %p112
    %p119 = scmp.eq.s32.totalorder %s9, 1
    %p120 = por %p118, %p119
    %p121 = scmp.ne.s32.totalorder %s113, %s116
    %p122 = scmp.eq.s32.totalorder %s9, 0
    %p123 = por %p121, %p122
    %p124 = scmp.ne.s32.totalorder %s113, %s116
    %p125 = scmp.eq.s32.totalorder %s14, 1
    %p126 = por %p124, %p125
    %p127 = scmp.ne.s32.totalorder %s116, %s117
    %p128 = scmp.eq.s32.totalorder %s14, 0
    %p129 = por %p127, %p128
    %p130 = scmp.ne.s32.totalorder %s116, %s117
    %p131 = scmp.eq.s32.totalorder %s15, 1
    %p132 = por %p130, %p131
    %p134 = scmp.ne.s32.totalorder %s117, %s133
    %p135 = scmp.eq.s32.totalorder %s15, 0
    %p136 = por %p134, %p135
    %p137 = scmp.le.s32.totalorder 1, %s9
    %p138 = scmp.lt.s32.totalorder %s9, 3
    %p139 = pnand %p137, %p138
    %p140 = pneg %p139
    // Predicated region
    $region9: #{tpu_custom_call.1} parent=5 // pred_check
      _
    $region10: #{tpu_custom_call.1} parent=5 // pred_check_branch
      %142 = sbr.rel (%p139) target = $region12
    $region11: #{tpu_custom_call.1} parent=5 // pred_region
      %s143 = ssub.s32 %s9, 1
    $region12: #{tpu_custom_call.1} parent=5 // pred_fallthru
      _
    %p144 = scmp.lt.s32.totalorder %s9, 2
    // Predicated region
    $region13: #{tpu_custom_call.1} parent=5 // pred_check
      %p145 = pneg %p144
    $region14: #{tpu_custom_call.1} parent=5 // pred_check_branch
      %147 = sbr.rel (%p145) target = $region16
    $region15: #{tpu_custom_call.1} parent=5 // pred_region
      // Predicated region
      $region17: #{tpu_custom_call.1} parent=15 // pred_check
        %p148 = pneg %p41
      $region18: #{tpu_custom_call.1} parent=15 // pred_check_branch
        %150 = sbr.rel (%p148) target = $region20
      $region19: #{tpu_custom_call.1} parent=15 // pred_region
        %p151 = scmp.lt.s32.totalorder %s16, 1
        %s152 = scalar_select %p151, %s16, 1
        %s153 = smul.addr %s152, 4
        %s154 = scalar_lea.vmem %s0, %s153
      $region20: #{tpu_custom_call.1} parent=15 // pred_fallthru
        _
      // Predicated region
      $region21: #{tpu_custom_call.1} parent=15 // pred_check
        %p155 = pneg %p69
      $region22: #{tpu_custom_call.1} parent=15 // pred_check_branch
        %157 = sbr.rel (%p155) target = $region24
      $region23: #{tpu_custom_call.1} parent=15 // pred_region
        %p158 = scmp.lt.s32.totalorder %s16, 1
        %s159 = scalar_select %p158, %s16, 1
        %p160 = scmp.lt.s32.totalorder %s17, 0
        %s161 = scalar_select %p160, %s17, 0
        %s162 = sadd.s32 %s161, %s159
        %s163 = smul.addr %s162, 4
        %s164 = scalar_lea.vmem %s1, %s163
      $region24: #{tpu_custom_call.1} parent=15 // pred_fallthru
        _
      // Predicated region
      $region25: #{tpu_custom_call.1} parent=15 // pred_check
        %p165 = pneg %p95
      $region26: #{tpu_custom_call.1} parent=15 // pred_check_branch
        %167 = sbr.rel (%p165) target = $region28
      $region27: #{tpu_custom_call.1} parent=15 // pred_region
        %p168 = scmp.lt.s32.totalorder %s16, 1
        %s169 = scalar_select %p168, %s16, 1
        %s170 = smul.addr %s169, 4
        %s171 = scalar_lea.vmem %s2, %s170
      $region28: #{tpu_custom_call.1} parent=15 // pred_fallthru
        _
    $region16: #{tpu_custom_call.1} parent=5 // pred_fallthru
      _
    %p172 = scmp.le.s32.totalorder 1, %s9
    %p173 = scmp.lt.s32.totalorder %s9, 3
    %p174 = pnand %p172, %p173
    %p175 = pneg %p174
    // Predicated region
    $region29: #{tpu_custom_call.1} parent=5 // pred_check
      _
    $region30: #{tpu_custom_call.1} parent=5 // pred_check_branch
      %177 = sbr.rel (%p174) target = $region32
    $region31: #{tpu_custom_call.1} parent=5 // pred_region
      %s178 = ssub.s32 %s9, 1
      %p179 = scmp.lt.s32.totalorder %s18, 1
      %s180 = scalar_select %p179, %s18, 1
      %s181 = smul.addr %s180, 4
      %s182 = scalar_lea.vmem %s0, %s181
      %p183 = pneg %p47
      %p184 = pneg %p44
      %p185 = scmp.lt.s32.totalorder %s18, 1
      %s186 = scalar_select %p185, %s18, 1
      %p187 = scmp.lt.s32.totalorder %s19, 0
      %s188 = scalar_select %p187, %s19, 0
      %s189 = sadd.s32 %s188, %s186
      %s190 = smul.addr %s189, 4
      %s191 = scalar_lea.vmem %s1, %s190
      %p192 = pneg %p75
      %p193 = pneg %p72
      %p194 = scmp.lt.s32.totalorder %s18, 1
      %s195 = scalar_select %p194, %s18, 1
      %s196 = smul.addr %s195, 4
      %s197 = scalar_lea.vmem %s2, %s196
      %p198 = pneg %p101
      %p199 = pneg %p98
      %p200 = pneg %p129
      %p201 = pneg %p126
      %p202 = scmp.lt.s32.totalorder %s18, 1
      %s203 = scalar_select %p202, %s18, 1
      %p204 = scmp.lt.s32.totalorder %s19, 0
      %s205 = scalar_select %p204, %s19, 0
      %s206 = smul.addr %s203, 8
      %s207 = sadd.s32 %s205, %s206
      %s208 = smul.addr %s207, 8
      %s209 = scalar_lea.vmem %s3, %s208
      %p210 = scmp.lt.s32.totalorder %s18, 1
      %s211 = scalar_select %p210, %s18, 1
      %s212 = smul.addr %s211, 4
      %s213 = scalar_lea.vmem %s0, %s212
      %p214 = scmp.lt.s32.totalorder %s18, 1
      %s215 = scalar_select %p214, %s18, 1
      %p216 = scmp.lt.s32.totalorder %s19, 0
      %s217 = scalar_select %p216, %s19, 0
      %s218 = sadd.s32 %s217, %s215
      %s219 = smul.addr %s218, 4
      %s220 = scalar_lea.vmem %s1, %s219
      %p221 = scmp.lt.s32.totalorder %s18, 1
      %s222 = scalar_select %p221, %s18, 1
      %s223 = smul.addr %s222, 4
      %s224 = scalar_lea.vmem %s2, %s223
      %p225 = scmp.lt.s32.totalorder %s18, 1
      %s226 = scalar_select %p225, %s18, 1
      %p227 = scmp.lt.s32.totalorder %s19, 0
      %s228 = scalar_select %p227, %s19, 0
      %s229 = smul.addr %s226, 8
      %s230 = sadd.s32 %s228, %s229
      %s231 = smul.addr %s230, 8
      %s232 = scalar_lea.vmem %s3, %s231
      %v233 = vld [vmem:[%s213] sm:$0x7]
      %v234 = vld [vmem:[%s220] sm:$0x7]
      %v235 = vld [vmem:[%s224] sm:$0xf]
      %v237 = vrot.slane %v235, 5
      %vm239 = vcmask 1042432
      %v240 = vsel %vm239, %v233, %v237
      %v241 = vsel %vm239, %v234, 0.0
      %v242 = vmul.f32 %v233, %v233
      %vm243 = vcmask 518144
      %v244 = vsel %vm243, %v242, 0.0
      %v245 = vrot.slane %v244, 4
      %v246 = vadd.f32 %v244, %v245
      %v247 = vrot.slane %v246, 2
      %v248 = vadd.f32 %v246, %v247
      %v249 = vrot.slane %v248, 1
      %v250 = vadd.f32 %v248, %v249
      %v251 = vmul.f32 %v234, %v234
      %vm252 = vcmask 256000
      %v253 = vsel %vm252, %v251, 0.0
      %v254 = vrot.slane %v253, 4
      %v255 = vadd.f32 %v253, %v254
      %v256 = vrot.slane %v255, 2
      %v257 = vadd.f32 %v255, %v256
      %v258 = vrot.slane %v257, 1
      %v259 = vadd.f32 %v257, %v258
      %v260 = vsel %vm239, %v233, %v250
      %vm261 = vcmask 1043456
      %v262 = vsel %vm261, %v260, 1.0
      %v263 = vmul.f32 %v234, -2.0
      %v264 = vsel %vm239, %v263, 1.0
      %v265 = vsel %vm261, %v264, %v259
      %266 = vxpose.xlu0.b32.start [1/16] %v262, 128
      %267 = vxpose.xlu0.b32.cont [2/16] 0.0, 128
      %268 = vxpose.xlu0.b32.cont [3/16] 0.0, 128
      %269 = vxpose.xlu0.b32.cont [4/16] 0.0, 128
      %270 = vxpose.xlu0.b32.cont [5/16] 0.0, 128
      %271 = vxpose.xlu0.b32.cont [6/16] 0.0, 128
      %272 = vxpose.xlu0.b32.cont [7/16] 0.0, 128
      %273 = vxpose.xlu0.b32.cont [8/16] 0.0, 128
      %274 = vxpose.xlu0.b32.cont [9/16] 0.0, 128
      %275 = vxpose.xlu0.b32.cont [10/16] 0.0, 128
      %276 = vxpose.xlu0.b32.cont [11/16] 0.0, 128
      %277 = vxpose.xlu0.b32.cont [12/16] 0.0, 128
      %278 = vxpose.xlu0.b32.cont [13/16] 0.0, 128
      %279 = vxpose.xlu0.b32.cont [14/16] 0.0, 128
      %280 = vxpose.xlu0.b32.cont [15/16] 0.0, 128
      %281 = vxpose.xlu0.b32.end [16/16] 0.0, 128
      %v282 = vpop.trf.xlu0
      %v283 = vpop.trf.xlu0
      %v284 = vpop.trf.xlu0
      %v285 = vpop.trf.xlu0
      %v286 = vpop.trf.xlu0
      %v287 = vpop.trf.xlu0
      %v288 = vpop.trf.xlu0
      %v289 = vpop.trf.xlu0
      %v290 = vpop.trf.xlu0
      %v291 = vpop.trf.xlu0
      %v292 = vpop.trf.xlu0
      %v293 = vpop.trf.xlu0
      %v294 = vpop.trf.xlu0
      %v295 = vpop.trf.xlu0
      %v296 = vpop.trf.xlu0
      %v297 = vpop.trf.xlu0
      %vm298 = vcmask 39936
      %v300 = vsel %vm298, %v282, 0
      %v303 = vsel %vm298, %v283, 0
      %v306 = vsel %vm298, %v284, 0
      %v309 = vsel %vm298, %v285, 0
      %v312 = vsel %vm298, %v286, 0
      %v315 = vsel %vm298, %v287, 0
      %v318 = vsel %vm298, %v288, 0
      %v321 = vsel %vm298, %v289, 0
      %vm323 = vcmask 1044480
      %v325 = vsel %vm323, %v265, 0
      %327 = vmatprep.subr.mxu0 0.0
      %328 = vmatpush1.msra.mxu0 0.0
      %329 = vmatprep.subr.mxu0 0.0
      %330 = vmatpush1.msra.mxu0 0.0
      %331 = vmatprep.subr.mxu0 0.0
      %332 = vmatpush1.msra.mxu0 0.0
      %333 = vmatprep.subr.mxu0 0.0
      %334 = vmatpush1.msra.mxu0 0.0
      %335 = vmatprep.subr.mxu0 0.0
      %336 = vmatpush1.msra.mxu0 0.0
      %337 = vmatprep.subr.mxu0 0.0
      %338 = vmatpush1.msra.mxu0 0.0
      %339 = vmatprep.subr.mxu0 0.0
      %340 = vmatpush1.msra.mxu0 0.0
      %341 = vmatprep.subr.mxu0 0.0
      %342 = vmatpush1.msra.mxu0 0.0
      %343 = vmatprep.subr.mxu0 0.0
      %344 = vmatpush1.msra.mxu0 0.0
      %345 = vmatprep.subr.mxu0 0.0
      %346 = vmatpush1.msra.mxu0 0.0
      %347 = vmatprep.subr.mxu0 0.0
      %348 = vmatpush1.msra.mxu0 0.0
      %349 = vmatprep.subr.mxu0 0.0
      %350 = vmatpush1.msra.mxu0 0.0
      %351 = vmatprep.subr.mxu0 0.0
      %352 = vmatpush1.msra.mxu0 0.0
      %353 = vmatprep.subr.mxu0 0.0
      %354 = vmatpush1.msra.mxu0 0.0
      %355 = vmatprep.subr.mxu0 0.0
      %356 = vmatpush1.msra.mxu0 0.0
      %357 = vmatprep.subr.mxu0 0.0
      %358 = vmatpush1.msra.mxu0 %v325
      %359 = vmatprep.subr.mxu0 0.0
      %360 = vmatpush2.msra.mxu0 0.0
      %361 = vmatprep.subr.mxu0 0.0
      %362 = vmatpush2.msra.mxu0 0.0
      %363 = vmatprep.subr.mxu0 0.0
      %364 = vmatpush2.msra.mxu0 0.0
      %365 = vmatprep.subr.mxu0 0.0
      %366 = vmatpush2.msra.mxu0 0.0
      %367 = vmatprep.subr.mxu0 0.0
      %368 = vmatpush2.msra.mxu0 0.0
      %369 = vmatprep.subr.mxu0 0.0
      %370 = vmatpush2.msra.mxu0 0.0
      %371 = vmatprep.subr.mxu0 0.0
      %372 = vmatpush2.msra.mxu0 0.0
      %373 = vmatprep.subr.mxu0 0.0
      %374 = vmatpush2.msra.mxu0 0.0
      %375 = vmatprep.subr.mxu0 0.0
      %376 = vmatpush2.msra.mxu0 0.0
      %377 = vmatprep.subr.mxu0 0.0
      %378 = vmatpush2.msra.mxu0 0.0
      %379 = vmatprep.subr.mxu0 0.0
      %380 = vmatpush2.msra.mxu0 0.0
      %381 = vmatprep.subr.mxu0 0.0
      %382 = vmatpush2.msra.mxu0 0.0
      %383 = vmatprep.subr.mxu0 0.0
      %384 = vmatpush2.msra.mxu0 0.0
      %385 = vmatprep.subr.mxu0 0.0
      %386 = vmatpush2.msra.mxu0 0.0
      %387 = vmatprep.subr.mxu0 0.0
      %388 = vmatpush2.msra.mxu0 0.0
      %389 = vmatprep.subr.mxu0 0.0
      %390 = vmatpush2.msra.mxu0 0.0
      %391 = vmatprep.mubr.f32.mxu0 0.0
      %392 = vmatmul.mubr.f32.gmra.mxu0 %v300
      %v393 = vpop.f32.mrf.mxu0
      %v394 = vadd.f32 0.0, %v393
      %v395 = vpop.f32.mrf.mxu0
      %396 = vmatprep.mubr.f32.mxu0 0.0
      %397 = vmatmul.mubr.f32.gmra.mxu0 %v303
      %v398 = vpop.f32.mrf.mxu0
      %v399 = vadd.f32 0.0, %v398
      %v400 = vpop.f32.mrf.mxu0
      %401 = vmatprep.mubr.f32.mxu0 0.0
      %402 = vmatmul.mubr.f32.gmra.mxu0 %v306
      %v403 = vpop.f32.mrf.mxu0
      %v404 = vadd.f32 0.0, %v403
      %v405 = vpop.f32.mrf.mxu0
      %406 = vmatprep.mubr.f32.mxu0 0.0
      %407 = vmatmul.mubr.f32.gmra.mxu0 %v309
      %v408 = vpop.f32.mrf.mxu0
      %v409 = vadd.f32 0.0, %v408
      %v410 = vpop.f32.mrf.mxu0
      %411 = vmatprep.mubr.f32.mxu0 0.0
      %412 = vmatmul.mubr.f32.gmra.mxu0 %v312
      %v413 = vpop.f32.mrf.mxu0
      %v414 = vadd.f32 0.0, %v413
      %v415 = vpop.f32.mrf.mxu0
      %416 = vmatprep.mubr.f32.mxu0 0.0
      %417 = vmatmul.mubr.f32.gmra.mxu0 %v315
      %v418 = vpop.f32.mrf.mxu0
      %v419 = vadd.f32 0.0, %v418
      %v420 = vpop.f32.mrf.mxu0
      %421 = vmatprep.mubr.f32.mxu0 0.0
      %422 = vmatmul.mubr.f32.gmra.mxu0 %v318
      %v423 = vpop.f32.mrf.mxu0
      %v424 = vadd.f32 0.0, %v423
      %v425 = vpop.f32.mrf.mxu0
      %426 = vmatprep.mubr.f32.mxu0 0.0
      %427 = vmatmul.mubr.f32.gmra.mxu0 %v321
      %v428 = vpop.f32.mrf.mxu0
      %v429 = vadd.f32 0.0, %v428
      %v430 = vpop.f32.mrf.mxu0
      %431 = vdwg.mxu0
      %v432 = vlaneseq
      %v433 = vshrl.u32 %v432, 7
      %v434 = vadd.s32 %v433, 8
      %v435 = vadd.s32 %v433, 16
      %v436 = vadd.s32 %v433, 24
      %v437 = vadd.s32 %v433, 32
      %v438 = vadd.s32 %v433, 40
      %v439 = vadd.s32 %v433, 48
      %v440 = vadd.s32 %v433, 56
      %vm441 = vcmask 261120
      %v442 = vsel %vm441, %v394, inf
      %v443 = vsel %vm441, %v399, inf
      %v444 = vsel %vm441, %v404, inf
      %v445 = vsel %vm441, %v409, inf
      %v446 = vsel %vm441, %v414, inf
      %v447 = vmin.f32 %v442, %v446
      %v448 = vsel %vm441, %v419, inf
      %v449 = vmin.f32 %v443, %v448
      %v450 = vsel %vm441, %v424, inf
      %v451 = vmin.f32 %v444, %v450
      %v452 = vsel %vm441, %v429, inf
      %v453 = vmin.f32 %v445, %v452
      %v454 = vmin.f32 %v447, %v449
      %v455 = vmin.f32 %v451, %v453
      %v456 = vmin.f32 %v454, %v455
      %v457 = vrot.slane %v456, 4
      %v458 = vmin.f32 %v456, %v457
      %v459 = vrot.slane %v458, 2
      %v460 = vmin.f32 %v458, %v459
      %v461 = vrot.slane %v460, 1
      %v462 = vmin.f32 %v460, %v461
      %vm463 = vcmp.eq.f32.partialorder %v394, %v462
      %vm464 = vcmp.eq.f32.partialorder %v399, %v462
      %vm465 = vcmp.eq.f32.partialorder %v404, %v462
      %vm466 = vcmp.eq.f32.partialorder %v409, %v462
      %vm467 = vcmp.eq.f32.partialorder %v414, %v462
      %vm468 = vcmp.eq.f32.partialorder %v419, %v462
      %vm469 = vcmp.eq.f32.partialorder %v424, %v462
      %vm470 = vcmp.eq.f32.partialorder %v429, %v462
      %v471 = vsel %vm463, %v433, 64
      %v472 = vsel %vm464, %v434, 64
      %v473 = vsel %vm465, %v435, 64
      %v474 = vsel %vm466, %v436, 64
      %v475 = vsel %vm467, %v437, 64
      %v476 = vsel %vm468, %v438, 64
      %v477 = vsel %vm469, %v439, 64
      %v478 = vsel %vm470, %v440, 64
      %v479 = vsel %vm441, %v471, 2147483647
      %v480 = vsel %vm441, %v472, 2147483647
      %v481 = vsel %vm441, %v473, 2147483647
      %v482 = vsel %vm441, %v474, 2147483647
      %v483 = vsel %vm441, %v475, 2147483647
      %vm484 = vcmp.lt.s32.totalorder %v479, %v483
      %v485 = vsel %vm484, %v479, %v483
      %v486 = vsel %vm441, %v476, 2147483647
      %vm487 = vcmp.lt.s32.totalorder %v480, %v486
      %v488 = vsel %vm487, %v480, %v486
      %v489 = vsel %vm441, %v477, 2147483647
      %vm490 = vcmp.lt.s32.totalorder %v481, %v489
      %v491 = vsel %vm490, %v481, %v489
      %v492 = vsel %vm441, %v478, 2147483647
      %vm493 = vcmp.lt.s32.totalorder %v482, %v492
      %v494 = vsel %vm493, %v482, %v492
      %vm495 = vcmp.lt.s32.totalorder %v485, %v488
      %v496 = vsel %vm495, %v485, %v488
      %vm497 = vcmp.lt.s32.totalorder %v491, %v494
      %v498 = vsel %vm497, %v491, %v494
      %vm499 = vcmp.lt.s32.totalorder %v496, %v498
      %v500 = vsel %vm499, %v496, %v498
      %v501 = vrot.slane %v500, 4
      %vm502 = vcmp.lt.s32.totalorder %v500, %v501
      %v503 = vsel %vm502, %v500, %v501
      %v504 = vrot.slane %v503, 2
      %vm505 = vcmp.lt.s32.totalorder %v503, %v504
      %v506 = vsel %vm505, %v503, %v504
      %v507 = vrot.slane %v506, 1
      %vm508 = vcmp.lt.s32.totalorder %v506, %v507
      %v509 = vsel %vm508, %v506, %v507
      %vm510 = vcmp.eq.s32.totalorder %v433, %v509
      %vm511 = vcmp.eq.s32.totalorder %v434, %v509
      %vm512 = vcmp.eq.s32.totalorder %v435, %v509
      %vm513 = vcmp.eq.s32.totalorder %v436, %v509
      %vm514 = vcmp.eq.s32.totalorder %v437, %v509
      %vm515 = vcmp.eq.s32.totalorder %v438, %v509
      %vm516 = vcmp.eq.s32.totalorder %v439, %v509
      %vm517 = vcmp.eq.s32.totalorder %v440, %v509
      %v518 = vsel %vm510, 1, 0
      %v519 = vsel %vm511, 1, 0
      %v520 = vsel %vm512, 1, 0
      %v521 = vsel %vm513, 1, 0
      %v522 = vsel %vm514, 1, 0
      %v523 = vsel %vm515, 1, 0
      %v524 = vsel %vm516, 1, 0
      %v525 = vsel %vm517, 1, 0
      %v526 = vcvt.s32.f32 %v518
      %v527 = vcvt.s32.f32 %v519
      %v528 = vcvt.s32.f32 %v520
      %v529 = vcvt.s32.f32 %v521
      %v530 = vcvt.s32.f32 %v522
      %v531 = vcvt.s32.f32 %v523
      %v532 = vcvt.s32.f32 %v524
      %v533 = vcvt.s32.f32 %v525
      %vm534 = vcmask 523264
      %v536 = vsel %vm534, %v240, 0
      %538 = vmatprep.subr.mxu0 0.0
      %539 = vmatpush1.msra.mxu0 0.0
      %540 = vmatprep.subr.mxu0 0.0
      %541 = vmatpush1.msra.mxu0 0.0
      %542 = vmatprep.subr.mxu0 0.0
      %543 = vmatpush1.msra.mxu0 0.0
      %544 = vmatprep.subr.mxu0 0.0
      %545 = vmatpush1.msra.mxu0 0.0
      %546 = vmatprep.subr.mxu0 0.0
      %547 = vmatpush1.msra.mxu0 0.0
      %548 = vmatprep.subr.mxu0 0.0
      %549 = vmatpush1.msra.mxu0 0.0
      %550 = vmatprep.subr.mxu0 0.0
      %551 = vmatpush1.msra.mxu0 0.0
      %552 = vmatprep.subr.mxu0 0.0
      %553 = vmatpush1.msra.mxu0 0.0
      %554 = vmatprep.subr.mxu0 0.0
      %555 = vmatpush1.msra.mxu0 %v533
      %556 = vmatprep.subr.mxu0 0.0
      %557 = vmatpush1.msra.mxu0 %v532
      %558 = vmatprep.subr.mxu0 0.0
      %559 = vmatpush1.msra.mxu0 %v531
      %560 = vmatprep.subr.mxu0 0.0
      %561 = vmatpush1.msra.mxu0 %v530
      %562 = vmatprep.subr.mxu0 0.0
      %563 = vmatpush1.msra.mxu0 %v529
      %564 = vmatprep.subr.mxu0 0.0
      %565 = vmatpush1.msra.mxu0 %v528
      %566 = vmatprep.subr.mxu0 0.0
      %567 = vmatpush1.msra.mxu0 %v527
      %568 = vmatprep.subr.mxu0 0.0
      %569 = vmatpush1.msra.mxu0 %v526
      %570 = vmatprep.subr.mxu0 0.0
      %571 = vmatpush2.msra.mxu0 0.0
      %572 = vmatprep.subr.mxu0 0.0
      %573 = vmatpush2.msra.mxu0 0.0
      %574 = vmatprep.subr.mxu0 0.0
      %575 = vmatpush2.msra.mxu0 0.0
      %576 = vmatprep.subr.mxu0 0.0
      %577 = vmatpush2.msra.mxu0 0.0
      %578 = vmatprep.subr.mxu0 0.0
      %579 = vmatpush2.msra.mxu0 0.0
      %580 = vmatprep.subr.mxu0 0.0
      %581 = vmatpush2.msra.mxu0 0.0
      %582 = vmatprep.subr.mxu0 0.0
      %583 = vmatpush2.msra.mxu0 0.0
      %584 = vmatprep.subr.mxu0 0.0
      %585 = vmatpush2.msra.mxu0 0.0
      %586 = vmatprep.subr.mxu0 0.0
      %587 = vmatpush2.msra.mxu0 0.0
      %588 = vmatprep.subr.mxu0 0.0
      %589 = vmatpush2.msra.mxu0 0.0
      %590 = vmatprep.subr.mxu0 0.0
      %591 = vmatpush2.msra.mxu0 0.0
      %592 = vmatprep.subr.mxu0 0.0
      %593 = vmatpush2.msra.mxu0 0.0
      %594 = vmatprep.subr.mxu0 0.0
      %595 = vmatpush2.msra.mxu0 0.0
      %596 = vmatprep.subr.mxu0 0.0
      %597 = vmatpush2.msra.mxu0 0.0
      %598 = vmatprep.subr.mxu0 0.0
      %599 = vmatpush2.msra.mxu0 0.0
      %600 = vmatprep.subr.mxu0 0.0
      %601 = vmatpush2.msra.mxu0 0.0
      %602 = vmatprep.mubr.f32.mxu0 0.0
      %603 = vmatmul.mubr.f32.gmra.mxu0 %v536
      %v604 = vpop.f32.mrf.mxu0
      %v605 = vadd.f32 0.0, %v604
      %v606 = vpop.f32.mrf.mxu0
      %607 = vdwg.mxu0
      %v608 = vsub.f32 %v605, %v241
      %vm609 = vcmask 260096
      %610 = vst.msk [vmem:[%s232] sm:$0x7f] %vm609, %v608
      %v611 = vsel %vm510, inf, %v394
      %v612 = vsel %vm511, inf, %v399
      %v613 = vsel %vm512, inf, %v404
      %v614 = vsel %vm513, inf, %v409
      %v615 = vsel %vm514, inf, %v414
      %v616 = vsel %vm515, inf, %v419
      %v617 = vsel %vm516, inf, %v424
      %v618 = vsel %vm517, inf, %v429
      %v619 = vsel %vm441, %v611, inf
      %v620 = vsel %vm441, %v612, inf
      %v621 = vsel %vm441, %v613, inf
      %v622 = vsel %vm441, %v614, inf
      %v623 = vsel %vm441, %v615, inf
      %v624 = vmin.f32 %v619, %v623
      %v625 = vsel %vm441, %v616, inf
      %v626 = vmin.f32 %v620, %v625
      %v627 = vsel %vm441, %v617, inf
      %v628 = vmin.f32 %v621, %v627
      %v629 = vsel %vm441, %v618, inf
      %v630 = vmin.f32 %v622, %v629
      %v631 = vmin.f32 %v624, %v626
      %v632 = vmin.f32 %v628, %v630
      %v633 = vmin.f32 %v631, %v632
      %v634 = vrot.slane %v633, 4
      %v635 = vmin.f32 %v633, %v634
      %v636 = vrot.slane %v635, 2
      %v637 = vmin.f32 %v635, %v636
      %v638 = vrot.slane %v637, 1
      %v639 = vmin.f32 %v637, %v638
      %vm640 = vcmp.eq.f32.partialorder %v611, %v639
      %vm641 = vcmp.eq.f32.partialorder %v612, %v639
      %vm642 = vcmp.eq.f32.partialorder %v613, %v639
      %vm643 = vcmp.eq.f32.partialorder %v614, %v639
      %vm644 = vcmp.eq.f32.partialorder %v615, %v639
      %vm645 = vcmp.eq.f32.partialorder %v616, %v639
      %vm646 = vcmp.eq.f32.partialorder %v617, %v639
      %vm647 = vcmp.eq.f32.partialorder %v618, %v639
      %v648 = vsel %vm640, %v433, 64
      %v649 = vsel %vm641, %v434, 64
      %v650 = vsel %vm642, %v435, 64
      %v651 = vsel %vm643, %v436, 64
      %v652 = vsel %vm644, %v437, 64
      %v653 = vsel %vm645, %v438, 64
      %v654 = vsel %vm646, %v439, 64
      %v655 = vsel %vm647, %v440, 64
      %v656 = vsel %vm441, %v648, 2147483647
      %v657 = vsel %vm441, %v649, 2147483647
      %v658 = vsel %vm441, %v650, 2147483647
      %v659 = vsel %vm441, %v651, 2147483647
      %v660 = vsel %vm441, %v652, 2147483647
      %vm661 = vcmp.lt.s32.totalorder %v656, %v660
      %v662 = vsel %vm661, %v656, %v660
      %v663 = vsel %vm441, %v653, 2147483647
      %vm664 = vcmp.lt.s32.totalorder %v657, %v663
      %v665 = vsel %vm664, %v657, %v663
      %v666 = vsel %vm441, %v654, 2147483647
      %vm667 = vcmp.lt.s32.totalorder %v658, %v666
      %v668 = vsel %vm667, %v658, %v666
      %v669 = vsel %vm441, %v655, 2147483647
      %vm670 = vcmp.lt.s32.totalorder %v659, %v669
      %v671 = vsel %vm670, %v659, %v669
      %vm672 = vcmp.lt.s32.totalorder %v662, %v665
      %v673 = vsel %vm672, %v662, %v665
      %vm674 = vcmp.lt.s32.totalorder %v668, %v671
      %v675 = vsel %vm674, %v668, %v671
      %vm676 = vcmp.lt.s32.totalorder %v673, %v675
      %v677 = vsel %vm676, %v673, %v675
      %v678 = vrot.slane %v677, 4
      %vm679 = vcmp.lt.s32.totalorder %v677, %v678
      %v680 = vsel %vm679, %v677, %v678
      %v681 = vrot.slane %v680, 2
      %vm682 = vcmp.lt.s32.totalorder %v680, %v681
      %v683 = vsel %vm682, %v680, %v681
      %v684 = vrot.slane %v683, 1
      %vm685 = vcmp.lt.s32.totalorder %v683, %v684
      %v686 = vsel %vm685, %v683, %v684
      %vm687 = vcmp.eq.s32.totalorder %v433, %v686
      %vm688 = vcmp.eq.s32.totalorder %v434, %v686
      %vm689 = vcmp.eq.s32.totalorder %v435, %v686
      %vm690 = vcmp.eq.s32.totalorder %v436, %v686
      %vm691 = vcmp.eq.s32.totalorder %v437, %v686
      %vm692 = vcmp.eq.s32.totalorder %v438, %v686
      %vm693 = vcmp.eq.s32.totalorder %v439, %v686
      %vm694 = vcmp.eq.s32.totalorder %v440, %v686
      %v695 = vsel %vm687, 1, 0
      %v696 = vsel %vm688, 1, 0
      %v697 = vsel %vm689, 1, 0
      %v698 = vsel %vm690, 1, 0
      %v699 = vsel %vm691, 1, 0
      %v700 = vsel %vm692, 1, 0
      %v701 = vsel %vm693, 1, 0
      %v702 = vsel %vm694, 1, 0
      %v703 = vcvt.s32.f32 %v695
      %v704 = vcvt.s32.f32 %v696
      %v705 = vcvt.s32.f32 %v697
      %v706 = vcvt.s32.f32 %v698
      %v707 = vcvt.s32.f32 %v699
      %v708 = vcvt.s32.f32 %v700
      %v709 = vcvt.s32.f32 %v701
      %v710 = vcvt.s32.f32 %v702
      %711 = vmatprep.subr.mxu0 0.0
      %712 = vmatpush1.msra.mxu0 0.0
      %713 = vmatprep.subr.mxu0 0.0
      %714 = vmatpush1.msra.mxu0 0.0
      %715 = vmatprep.subr.mxu0 0.0
      %716 = vmatpush1.msra.mxu0 0.0
      %717 = vmatprep.subr.mxu0 0.0
      %718 = vmatpush1.msra.mxu0 0.0
      %719 = vmatprep.subr.mxu0 0.0
      %720 = vmatpush1.msra.mxu0 0.0
      %721 = vmatprep.subr.mxu0 0.0
      %722 = vmatpush1.msra.mxu0 0.0
      %723 = vmatprep.subr.mxu0 0.0
      %724 = vmatpush1.msra.mxu0 0.0
      %725 = vmatprep.subr.mxu0 0.0
      %726 = vmatpush1.msra.mxu0 0.0
      %727 = vmatprep.subr.mxu0 0.0
      %728 = vmatpush1.msra.mxu0 %v710
      %729 = vmatprep.subr.mxu0 0.0
      %730 = vmatpush1.msra.mxu0 %v709
      %731 = vmatprep.subr.mxu0 0.0
      %732 = vmatpush1.msra.mxu0 %v708
      %733 = vmatprep.subr.mxu0 0.0
      %734 = vmatpush1.msra.mxu0 %v707
      %735 = vmatprep.subr.mxu0 0.0
      %736 = vmatpush1.msra.mxu0 %v706
      %737 = vmatprep.subr.mxu0 0.0
      %738 = vmatpush1.msra.mxu0 %v705
      %739 = vmatprep.subr.mxu0 0.0
      %740 = vmatpush1.msra.mxu0 %v704
      %741 = vmatprep.subr.mxu0 0.0
      %742 = vmatpush1.msra.mxu0 %v703
      %743 = vmatprep.subr.mxu0 0.0
      %744 = vmatpush2.msra.mxu0 0.0
      %745 = vmatprep.subr.mxu0 0.0
      %746 = vmatpush2.msra.mxu0 0.0
      %747 = vmatprep.subr.mxu0 0.0
      %748 = vmatpush2.msra.mxu0 0.0
      %749 = vmatprep.subr.mxu0 0.0
      %750 = vmatpush2.msra.mxu0 0.0
      %751 = vmatprep.subr.mxu0 0.0
      %752 = vmatpush2.msra.mxu0 0.0
      %753 = vmatprep.subr.mxu0 0.0
      %754 = vmatpush2.msra.mxu0 0.0
      %755 = vmatprep.subr.mxu0 0.0
      %756 = vmatpush2.msra.mxu0 0.0
      %757 = vmatprep.subr.mxu0 0.0
      %758 = vmatpush2.msra.mxu0 0.0
      %759 = vmatprep.subr.mxu0 0.0
      %760 = vmatpush2.msra.mxu0 0.0
      %761 = vmatprep.subr.mxu0 0.0
      %762 = vmatpush2.msra.mxu0 0.0
      %763 = vmatprep.subr.mxu0 0.0
      %764 = vmatpush2.msra.mxu0 0.0
      %765 = vmatprep.subr.mxu0 0.0
      %766 = vmatpush2.msra.mxu0 0.0
      %767 = vmatprep.subr.mxu0 0.0
      %768 = vmatpush2.msra.mxu0 0.0
      %769 = vmatprep.subr.mxu0 0.0
      %770 = vmatpush2.msra.mxu0 0.0
      %771 = vmatprep.subr.mxu0 0.0
      %772 = vmatpush2.msra.mxu0 0.0
      %773 = vmatprep.subr.mxu0 0.0
      %774 = vmatpush2.msra.mxu0 0.0
      %775 = vmatprep.mubr.f32.mxu0 0.0
      %776 = vmatmul.mubr.f32.gmra.mxu0 %v536
      %v777 = vpop.f32.mrf.mxu0
      %v778 = vadd.f32 0.0, %v777
      %v779 = vpop.f32.mrf.mxu0
      %780 = vdwg.mxu0
      %v781 = vsub.f32 %v778, %v241
      %s782 = scalar_lea.vmem %s232, 8
      %783 = vst.msk [vmem:[%s782] sm:$0x7f] %vm609, %v781
      %v784 = vsel %vm687, inf, %v611
      %v785 = vsel %vm688, inf, %v612
      %v786 = vsel %vm689, inf, %v613
      %v787 = vsel %vm690, inf, %v614
      %v788 = vsel %vm691, inf, %v615
      %v789 = vsel %vm692, inf, %v616
      %v790 = vsel %vm693, inf, %v617
      %v791 = vsel %vm694, inf, %v618
      %v792 = vsel %vm441, %v784, inf
      %v793 = vsel %vm441, %v785, inf
      %v794 = vsel %vm441, %v786, inf
      %v795 = vsel %vm441, %v787, inf
      %v796 = vsel %vm441, %v788, inf
      %v797 = vmin.f32 %v792, %v796
      %v798 = vsel %vm441, %v789, inf
      %v799 = vmin.f32 %v793, %v798
      %v800 = vsel %vm441, %v790, inf
      %v801 = vmin.f32 %v794, %v800
      %v802 = vsel %vm441, %v791, inf
      %v803 = vmin.f32 %v795, %v802
      %v804 = vmin.f32 %v797, %v799
      %v805 = vmin.f32 %v801, %v803
      %v806 = vmin.f32 %v804, %v805
      %v807 = vrot.slane %v806, 4
      %v808 = vmin.f32 %v806, %v807
      %v809 = vrot.slane %v808, 2
      %v810 = vmin.f32 %v808, %v809
      %v811 = vrot.slane %v810, 1
      %v812 = vmin.f32 %v810, %v811
      %vm813 = vcmp.eq.f32.partialorder %v784, %v812
      %vm814 = vcmp.eq.f32.partialorder %v785, %v812
      %vm815 = vcmp.eq.f32.partialorder %v786, %v812
      %vm816 = vcmp.eq.f32.partialorder %v787, %v812
      %vm817 = vcmp.eq.f32.partialorder %v788, %v812
      %vm818 = vcmp.eq.f32.partialorder %v789, %v812
      %vm819 = vcmp.eq.f32.partialorder %v790, %v812
      %vm820 = vcmp.eq.f32.partialorder %v791, %v812
      %v821 = vsel %vm813, %v433, 64
      %v822 = vsel %vm814, %v434, 64
      %v823 = vsel %vm815, %v435, 64
      %v824 = vsel %vm816, %v436, 64
      %v825 = vsel %vm817, %v437, 64
      %v826 = vsel %vm818, %v438, 64
      %v827 = vsel %vm819, %v439, 64
      %v828 = vsel %vm820, %v440, 64
      %v829 = vsel %vm441, %v821, 2147483647
      %v830 = vsel %vm441, %v822, 2147483647
      %v831 = vsel %vm441, %v823, 2147483647
      %v832 = vsel %vm441, %v824, 2147483647
      %v833 = vsel %vm441, %v825, 2147483647
      %vm834 = vcmp.lt.s32.totalorder %v829, %v833
      %v835 = vsel %vm834, %v829, %v833
      %v836 = vsel %vm441, %v826, 2147483647
      %vm837 = vcmp.lt.s32.totalorder %v830, %v836
      %v838 = vsel %vm837, %v830, %v836
      %v839 = vsel %vm441, %v827, 2147483647
      %vm840 = vcmp.lt.s32.totalorder %v831, %v839
      %v841 = vsel %vm840, %v831, %v839
      %v842 = vsel %vm441, %v828, 2147483647
      %vm843 = vcmp.lt.s32.totalorder %v832, %v842
      %v844 = vsel %vm843, %v832, %v842
      %vm845 = vcmp.lt.s32.totalorder %v835, %v838
      %v846 = vsel %vm845, %v835, %v838
      %vm847 = vcmp.lt.s32.totalorder %v841, %v844
      %v848 = vsel %vm847, %v841, %v844
      %vm849 = vcmp.lt.s32.totalorder %v846, %v848
      %v850 = vsel %vm849, %v846, %v848
      %v851 = vrot.slane %v850, 4
      %vm852 = vcmp.lt.s32.totalorder %v850, %v851
      %v853 = vsel %vm852, %v850, %v851
      %v854 = vrot.slane %v853, 2
      %vm855 = vcmp.lt.s32.totalorder %v853, %v854
      %v856 = vsel %vm855, %v853, %v854
      %v857 = vrot.slane %v856, 1
      %vm858 = vcmp.lt.s32.totalorder %v856, %v857
      %v859 = vsel %vm858, %v856, %v857
      %vm860 = vcmp.eq.s32.totalorder %v433, %v859
      %vm861 = vcmp.eq.s32.totalorder %v434, %v859
      %vm862 = vcmp.eq.s32.totalorder %v435, %v859
      %vm863 = vcmp.eq.s32.totalorder %v436, %v859
      %vm864 = vcmp.eq.s32.totalorder %v437, %v859
      %vm865 = vcmp.eq.s32.totalorder %v438, %v859
      %vm866 = vcmp.eq.s32.totalorder %v439, %v859
      %vm867 = vcmp.eq.s32.totalorder %v440, %v859
      %v868 = vsel %vm860, 1, 0
      %v869 = vsel %vm861, 1, 0
      %v870 = vsel %vm862, 1, 0
      %v871 = vsel %vm863, 1, 0
      %v872 = vsel %vm864, 1, 0
      %v873 = vsel %vm865, 1, 0
      %v874 = vsel %vm866, 1, 0
      %v875 = vsel %vm867, 1, 0
      %v876 = vcvt.s32.f32 %v868
      %v877 = vcvt.s32.f32 %v869
      %v878 = vcvt.s32.f32 %v870
      %v879 = vcvt.s32.f32 %v871
      %v880 = vcvt.s32.f32 %v872
      %v881 = vcvt.s32.f32 %v873
      %v882 = vcvt.s32.f32 %v874
      %v883 = vcvt.s32.f32 %v875
      %884 = vmatprep.subr.mxu0 0.0
      %885 = vmatpush1.msra.mxu0 0.0
      %886 = vmatprep.subr.mxu0 0.0
      %887 = vmatpush1.msra.mxu0 0.0
      %888 = vmatprep.subr.mxu0 0.0
      %889 = vmatpush1.msra.mxu0 0.0
      %890 = vmatprep.subr.mxu0 0.0
      %891 = vmatpush1.msra.mxu0 0.0
      %892 = vmatprep.subr.mxu0 0.0
      %893 = vmatpush1.msra.mxu0 0.0
      %894 = vmatprep.subr.mxu0 0.0
      %895 = vmatpush1.msra.mxu0 0.0
      %896 = vmatprep.subr.mxu0 0.0
      %897 = vmatpush1.msra.mxu0 0.0
      %898 = vmatprep.subr.mxu0 0.0
      %899 = vmatpush1.msra.mxu0 0.0
      %900 = vmatprep.subr.mxu0 0.0
      %901 = vmatpush1.msra.mxu0 %v883
      %902 = vmatprep.subr.mxu0 0.0
      %903 = vmatpush1.msra.mxu0 %v882
      %904 = vmatprep.subr.mxu0 0.0
      %905 = vmatpush1.msra.mxu0 %v881
      %906 = vmatprep.subr.mxu0 0.0
      %907 = vmatpush1.msra.mxu0 %v880
      %908 = vmatprep.subr.mxu0 0.0
      %909 = vmatpush1.msra.mxu0 %v879
      %910 = vmatprep.subr.mxu0 0.0
      %911 = vmatpush1.msra.mxu0 %v878
      %912 = vmatprep.subr.mxu0 0.0
      %913 = vmatpush1.msra.mxu0 %v877
      %914 = vmatprep.subr.mxu0 0.0
      %915 = vmatpush1.msra.mxu0 %v876
      %916 = vmatprep.subr.mxu0 0.0
      %917 = vmatpush2.msra.mxu0 0.0
      %918 = vmatprep.subr.mxu0 0.0
      %919 = vmatpush2.msra.mxu0 0.0
      %920 = vmatprep.subr.mxu0 0.0
      %921 = vmatpush2.msra.mxu0 0.0
      %922 = vmatprep.subr.mxu0 0.0
      %923 = vmatpush2.msra.mxu0 0.0
      %924 = vmatprep.subr.mxu0 0.0
      %925 = vmatpush2.msra.mxu0 0.0
      %926 = vmatprep.subr.mxu0 0.0
      %927 = vmatpush2.msra.mxu0 0.0
      %928 = vmatprep.subr.mxu0 0.0
      %929 = vmatpush2.msra.mxu0 0.0
      %930 = vmatprep.subr.mxu0 0.0
      %931 = vmatpush2.msra.mxu0 0.0
      %932 = vmatprep.subr.mxu0 0.0
      %933 = vmatpush2.msra.mxu0 0.0
      %934 = vmatprep.subr.mxu0 0.0
      %935 = vmatpush2.msra.mxu0 0.0
      %936 = vmatprep.subr.mxu0 0.0
      %937 = vmatpush2.msra.mxu0 0.0
      %938 = vmatprep.subr.mxu0 0.0
      %939 = vmatpush2.msra.mxu0 0.0
      %940 = vmatprep.subr.mxu0 0.0
      %941 = vmatpush2.msra.mxu0 0.0
      %942 = vmatprep.subr.mxu0 0.0
      %943 = vmatpush2.msra.mxu0 0.0
      %944 = vmatprep.subr.mxu0 0.0
      %945 = vmatpush2.msra.mxu0 0.0
      %946 = vmatprep.subr.mxu0 0.0
      %947 = vmatpush2.msra.mxu0 0.0
      %948 = vmatprep.mubr.f32.mxu0 0.0
      %949 = vmatmul.mubr.f32.gmra.mxu0 %v536
      %v950 = vpop.f32.mrf.mxu0
      %v951 = vadd.f32 0.0, %v950
      %v952 = vpop.f32.mrf.mxu0
      %953 = vdwg.mxu0
      %v954 = vsub.f32 %v951, %v241
      %s955 = scalar_lea.vmem %s232, 16
      %956 = vst.msk [vmem:[%s955] sm:$0x7f] %vm609, %v954
      %v957 = vsel %vm860, inf, %v784
      %v958 = vsel %vm861, inf, %v785
      %v959 = vsel %vm862, inf, %v786
      %v960 = vsel %vm863, inf, %v787
      %v961 = vsel %vm864, inf, %v788
      %v962 = vsel %vm865, inf, %v789
      %v963 = vsel %vm866, inf, %v790
      %v964 = vsel %vm867, inf, %v791
      %v965 = vsel %vm441, %v957, inf
      %v966 = vsel %vm441, %v958, inf
      %v967 = vsel %vm441, %v959, inf
      %v968 = vsel %vm441, %v960, inf
      %v969 = vsel %vm441, %v961, inf
      %v970 = vmin.f32 %v965, %v969
      %v971 = vsel %vm441, %v962, inf
      %v972 = vmin.f32 %v966, %v971
      %v973 = vsel %vm441, %v963, inf
      %v974 = vmin.f32 %v967, %v973
      %v975 = vsel %vm441, %v964, inf
      %v976 = vmin.f32 %v968, %v975
      %v977 = vmin.f32 %v970, %v972
      %v978 = vmin.f32 %v974, %v976
      %v979 = vmin.f32 %v977, %v978
      %v980 = vrot.slane %v979, 4
      %v981 = vmin.f32 %v979, %v980
      %v982 = vrot.slane %v981, 2
      %v983 = vmin.f32 %v981, %v982
      %v984 = vrot.slane %v983, 1
      %v985 = vmin.f32 %v983, %v984
      %vm986 = vcmp.eq.f32.partialorder %v957, %v985
      %vm987 = vcmp.eq.f32.partialorder %v958, %v985
      %vm988 = vcmp.eq.f32.partialorder %v959, %v985
      %vm989 = vcmp.eq.f32.partialorder %v960, %v985
      %vm990 = vcmp.eq.f32.partialorder %v961, %v985
      %vm991 = vcmp.eq.f32.partialorder %v962, %v985
      %vm992 = vcmp.eq.f32.partialorder %v963, %v985
      %vm993 = vcmp.eq.f32.partialorder %v964, %v985
      %v994 = vsel %vm986, %v433, 64
      %v995 = vsel %vm987, %v434, 64
      %v996 = vsel %vm988, %v435, 64
      %v997 = vsel %vm989, %v436, 64
      %v998 = vsel %vm990, %v437, 64
      %v999 = vsel %vm991, %v438, 64
      %v1000 = vsel %vm992, %v439, 64
      %v1001 = vsel %vm993, %v440, 64
      %v1002 = vsel %vm441, %v994, 2147483647
      %v1003 = vsel %vm441, %v995, 2147483647
      %v1004 = vsel %vm441, %v996, 2147483647
      %v1005 = vsel %vm441, %v997, 2147483647
      %v1006 = vsel %vm441, %v998, 2147483647
      %vm1007 = vcmp.lt.s32.totalorder %v1002, %v1006
      %v1008 = vsel %vm1007, %v1002, %v1006
      %v1009 = vsel %vm441, %v999, 2147483647
      %vm1010 = vcmp.lt.s32.totalorder %v1003, %v1009
      %v1011 = vsel %vm1010, %v1003, %v1009
      %v1012 = vsel %vm441, %v1000, 2147483647
      %vm1013 = vcmp.lt.s32.totalorder %v1004, %v1012
      %v1014 = vsel %vm1013, %v1004, %v1012
      %v1015 = vsel %vm441, %v1001, 2147483647
      %vm1016 = vcmp.lt.s32.totalorder %v1005, %v1015
      %v1017 = vsel %vm1016, %v1005, %v1015
      %vm1018 = vcmp.lt.s32.totalorder %v1008, %v1011
      %v1019 = vsel %vm1018, %v1008, %v1011
      %vm1020 = vcmp.lt.s32.totalorder %v1014, %v1017
      %v1021 = vsel %vm1020, %v1014, %v1017
      %vm1022 = vcmp.lt.s32.totalorder %v1019, %v1021
      %v1023 = vsel %vm1022, %v1019, %v1021
      %v1024 = vrot.slane %v1023, 4
      %vm1025 = vcmp.lt.s32.totalorder %v1023, %v1024
      %v1026 = vsel %vm1025, %v1023, %v1024
      %v1027 = vrot.slane %v1026, 2
      %vm1028 = vcmp.lt.s32.totalorder %v1026, %v1027
      %v1029 = vsel %vm1028, %v1026, %v1027
      %v1030 = vrot.slane %v1029, 1
      %vm1031 = vcmp.lt.s32.totalorder %v1029, %v1030
      %v1032 = vsel %vm1031, %v1029, %v1030
      %vm1033 = vcmp.eq.s32.totalorder %v433, %v1032
      %vm1034 = vcmp.eq.s32.totalorder %v434, %v1032
      %vm1035 = vcmp.eq.s32.totalorder %v435, %v1032
      %vm1036 = vcmp.eq.s32.totalorder %v436, %v1032
      %vm1037 = vcmp.eq.s32.totalorder %v437, %v1032
      %vm1038 = vcmp.eq.s32.totalorder %v438, %v1032
      %vm1039 = vcmp.eq.s32.totalorder %v439, %v1032
      %vm1040 = vcmp.eq.s32.totalorder %v440, %v1032
      %v1041 = vsel %vm1033, 1, 0
      %v1042 = vsel %vm1034, 1, 0
      %v1043 = vsel %vm1035, 1, 0
      %v1044 = vsel %vm1036, 1, 0
      %v1045 = vsel %vm1037, 1, 0
      %v1046 = vsel %vm1038, 1, 0
      %v1047 = vsel %vm1039, 1, 0
      %v1048 = vsel %vm1040, 1, 0
      %v1049 = vcvt.s32.f32 %v1041
      %v1050 = vcvt.s32.f32 %v1042
      %v1051 = vcvt.s32.f32 %v1043
      %v1052 = vcvt.s32.f32 %v1044
      %v1053 = vcvt.s32.f32 %v1045
      %v1054 = vcvt.s32.f32 %v1046
      %v1055 = vcvt.s32.f32 %v1047
      %v1056 = vcvt.s32.f32 %v1048
      %1057 = vmatprep.subr.mxu0 0.0
      %1058 = vmatpush1.msra.mxu0 0.0
      %1059 = vmatprep.subr.mxu0 0.0
      %1060 = vmatpush1.msra.mxu0 0.0
      %1061 = vmatprep.subr.mxu0 0.0
      %1062 = vmatpush1.msra.mxu0 0.0
      %1063 = vmatprep.subr.mxu0 0.0
      %1064 = vmatpush1.msra.mxu0 0.0
      %1065 = vmatprep.subr.mxu0 0.0
      %1066 = vmatpush1.msra.mxu0 0.0
      %1067 = vmatprep.subr.mxu0 0.0
      %1068 = vmatpush1.msra.mxu0 0.0
      %1069 = vmatprep.subr.mxu0 0.0
      %1070 = vmatpush1.msra.mxu0 0.0
      %1071 = vmatprep.subr.mxu0 0.0
      %1072 = vmatpush1.msra.mxu0 0.0
      %1073 = vmatprep.subr.mxu0 0.0
      %1074 = vmatpush1.msra.mxu0 %v1056
      %1075 = vmatprep.subr.mxu0 0.0
      %1076 = vmatpush1.msra.mxu0 %v1055
      %1077 = vmatprep.subr.mxu0 0.0
      %1078 = vmatpush1.msra.mxu0 %v1054
      %1079 = vmatprep.subr.mxu0 0.0
      %1080 = vmatpush1.msra.mxu0 %v1053
      %1081 = vmatprep.subr.mxu0 0.0
      %1082 = vmatpush1.msra.mxu0 %v1052
      %1083 = vmatprep.subr.mxu0 0.0
      %1084 = vmatpush1.msra.mxu0 %v1051
      %1085 = vmatprep.subr.mxu0 0.0
      %1086 = vmatpush1.msra.mxu0 %v1050
      %1087 = vmatprep.subr.mxu0 0.0
      %1088 = vmatpush1.msra.mxu0 %v1049
      %1089 = vmatprep.subr.mxu0 0.0
      %1090 = vmatpush2.msra.mxu0 0.0
      %1091 = vmatprep.subr.mxu0 0.0
      %1092 = vmatpush2.msra.mxu0 0.0
      %1093 = vmatprep.subr.mxu0 0.0
      %1094 = vmatpush2.msra.mxu0 0.0
      %1095 = vmatprep.subr.mxu0 0.0
      %1096 = vmatpush2.msra.mxu0 0.0
      %1097 = vmatprep.subr.mxu0 0.0
      %1098 = vmatpush2.msra.mxu0 0.0
      %1099 = vmatprep.subr.mxu0 0.0
      %1100 = vmatpush2.msra.mxu0 0.0
      %1101 = vmatprep.subr.mxu0 0.0
      %1102 = vmatpush2.msra.mxu0 0.0
      %1103 = vmatprep.subr.mxu0 0.0
      %1104 = vmatpush2.msra.mxu0 0.0
      %1105 = vmatprep.subr.mxu0 0.0
      %1106 = vmatpush2.msra.mxu0 0.0
      %1107 = vmatprep.subr.mxu0 0.0
      %1108 = vmatpush2.msra.mxu0 0.0
      %1109 = vmatprep.subr.mxu0 0.0
      %1110 = vmatpush2.msra.mxu0 0.0
      %1111 = vmatprep.subr.mxu0 0.0
      %1112 = vmatpush2.msra.mxu0 0.0
      %1113 = vmatprep.subr.mxu0 0.0
      %1114 = vmatpush2.msra.mxu0 0.0
      %1115 = vmatprep.subr.mxu0 0.0
      %1116 = vmatpush2.msra.mxu0 0.0
      %1117 = vmatprep.subr.mxu0 0.0
      %1118 = vmatpush2.msra.mxu0 0.0
      %1119 = vmatprep.subr.mxu0 0.0
      %1120 = vmatpush2.msra.mxu0 0.0
      %1121 = vmatprep.mubr.f32.mxu0 0.0
      %1122 = vmatmul.mubr.f32.gmra.mxu0 %v536
      %v1123 = vpop.f32.mrf.mxu0
      %v1124 = vadd.f32 0.0, %v1123
      %v1125 = vpop.f32.mrf.mxu0
      %1126 = vdwg.mxu0
      %v1127 = vsub.f32 %v1124, %v241
      %s1128 = scalar_lea.vmem %s232, 24
      %1129 = vst.msk [vmem:[%s1128] sm:$0x7f] %vm609, %v1127
      %v1130 = vsel %vm1033, inf, %v957
      %v1131 = vsel %vm1034, inf, %v958
      %v1132 = vsel %vm1035, inf, %v959
      %v1133 = vsel %vm1036, inf, %v960
      %v1134 = vsel %vm1037, inf, %v961
      %v1135 = vsel %vm1038, inf, %v962
      %v1136 = vsel %vm1039, inf, %v963
      %v1137 = vsel %vm1040, inf, %v964
      %v1138 = vsel %vm441, %v1130, inf
      %v1139 = vsel %vm441, %v1131, inf
      %v1140 = vsel %vm441, %v1132, inf
      %v1141 = vsel %vm441, %v1133, inf
      %v1142 = vsel %vm441, %v1134, inf
      %v1143 = vmin.f32 %v1138, %v1142
      %v1144 = vsel %vm441, %v1135, inf
      %v1145 = vmin.f32 %v1139, %v1144
      %v1146 = vsel %vm441, %v1136, inf
      %v1147 = vmin.f32 %v1140, %v1146
      %v1148 = vsel %vm441, %v1137, inf
      %v1149 = vmin.f32 %v1141, %v1148
      %v1150 = vmin.f32 %v1143, %v1145
      %v1151 = vmin.f32 %v1147, %v1149
      %v1152 = vmin.f32 %v1150, %v1151
      %v1153 = vrot.slane %v1152, 4
      %v1154 = vmin.f32 %v1152, %v1153
      %v1155 = vrot.slane %v1154, 2
      %v1156 = vmin.f32 %v1154, %v1155
      %v1157 = vrot.slane %v1156, 1
      %v1158 = vmin.f32 %v1156, %v1157
      %vm1159 = vcmp.eq.f32.partialorder %v1130, %v1158
      %vm1160 = vcmp.eq.f32.partialorder %v1131, %v1158
      %vm1161 = vcmp.eq.f32.partialorder %v1132, %v1158
      %vm1162 = vcmp.eq.f32.partialorder %v1133, %v1158
      %vm1163 = vcmp.eq.f32.partialorder %v1134, %v1158
      %vm1164 = vcmp.eq.f32.partialorder %v1135, %v1158
      %vm1165 = vcmp.eq.f32.partialorder %v1136, %v1158
      %vm1166 = vcmp.eq.f32.partialorder %v1137, %v1158
      %v1167 = vsel %vm1159, %v433, 64
      %v1168 = vsel %vm1160, %v434, 64
      %v1169 = vsel %vm1161, %v435, 64
      %v1170 = vsel %vm1162, %v436, 64
      %v1171 = vsel %vm1163, %v437, 64
      %v1172 = vsel %vm1164, %v438, 64
      %v1173 = vsel %vm1165, %v439, 64
      %v1174 = vsel %vm1166, %v440, 64
      %v1175 = vsel %vm441, %v1167, 2147483647
      %v1176 = vsel %vm441, %v1168, 2147483647
      %v1177 = vsel %vm441, %v1169, 2147483647
      %v1178 = vsel %vm441, %v1170, 2147483647
      %v1179 = vsel %vm441, %v1171, 2147483647
      %vm1180 = vcmp.lt.s32.totalorder %v1175, %v1179
      %v1181 = vsel %vm1180, %v1175, %v1179
      %v1182 = vsel %vm441, %v1172, 2147483647
      %vm1183 = vcmp.lt.s32.totalorder %v1176, %v1182
      %v1184 = vsel %vm1183, %v1176, %v1182
      %v1185 = vsel %vm441, %v1173, 2147483647
      %vm1186 = vcmp.lt.s32.totalorder %v1177, %v1185
      %v1187 = vsel %vm1186, %v1177, %v1185
      %v1188 = vsel %vm441, %v1174, 2147483647
      %vm1189 = vcmp.lt.s32.totalorder %v1178, %v1188
      %v1190 = vsel %vm1189, %v1178, %v1188
      %vm1191 = vcmp.lt.s32.totalorder %v1181, %v1184
      %v1192 = vsel %vm1191, %v1181, %v1184
      %vm1193 = vcmp.lt.s32.totalorder %v1187, %v1190
      %v1194 = vsel %vm1193, %v1187, %v1190
      %vm1195 = vcmp.lt.s32.totalorder %v1192, %v1194
      %v1196 = vsel %vm1195, %v1192, %v1194
      %v1197 = vrot.slane %v1196, 4
      %vm1198 = vcmp.lt.s32.totalorder %v1196, %v1197
      %v1199 = vsel %vm1198, %v1196, %v1197
      %v1200 = vrot.slane %v1199, 2
      %vm1201 = vcmp.lt.s32.totalorder %v1199, %v1200
      %v1202 = vsel %vm1201, %v1199, %v1200
      %v1203 = vrot.slane %v1202, 1
      %vm1204 = vcmp.lt.s32.totalorder %v1202, %v1203
      %v1205 = vsel %vm1204, %v1202, %v1203
      %vm1206 = vcmp.eq.s32.totalorder %v433, %v1205
      %vm1207 = vcmp.eq.s32.totalorder %v434, %v1205
      %vm1208 = vcmp.eq.s32.totalorder %v435, %v1205
      %vm1209 = vcmp.eq.s32.totalorder %v436, %v1205
      %vm1210 = vcmp.eq.s32.totalorder %v437, %v1205
      %vm1211 = vcmp.eq.s32.totalorder %v438, %v1205
      %vm1212 = vcmp.eq.s32.totalorder %v439, %v1205
      %vm1213 = vcmp.eq.s32.totalorder %v440, %v1205
      %v1214 = vsel %vm1206, 1, 0
      %v1215 = vsel %vm1207, 1, 0
      %v1216 = vsel %vm1208, 1, 0
      %v1217 = vsel %vm1209, 1, 0
      %v1218 = vsel %vm1210, 1, 0
      %v1219 = vsel %vm1211, 1, 0
      %v1220 = vsel %vm1212, 1, 0
      %v1221 = vsel %vm1213, 1, 0
      %v1222 = vcvt.s32.f32 %v1214
      %v1223 = vcvt.s32.f32 %v1215
      %v1224 = vcvt.s32.f32 %v1216
      %v1225 = vcvt.s32.f32 %v1217
      %v1226 = vcvt.s32.f32 %v1218
      %v1227 = vcvt.s32.f32 %v1219
      %v1228 = vcvt.s32.f32 %v1220
      %v1229 = vcvt.s32.f32 %v1221
      %1230 = vmatprep.subr.mxu0 0.0
      %1231 = vmatpush1.msra.mxu0 0.0
      %1232 = vmatprep.subr.mxu0 0.0
      %1233 = vmatpush1.msra.mxu0 0.0
      %1234 = vmatprep.subr.mxu0 0.0
      %1235 = vmatpush1.msra.mxu0 0.0
      %1236 = vmatprep.subr.mxu0 0.0
      %1237 = vmatpush1.msra.mxu0 0.0
      %1238 = vmatprep.subr.mxu0 0.0
      %1239 = vmatpush1.msra.mxu0 0.0
      %1240 = vmatprep.subr.mxu0 0.0
      %1241 = vmatpush1.msra.mxu0 0.0
      %1242 = vmatprep.subr.mxu0 0.0
      %1243 = vmatpush1.msra.mxu0 0.0
      %1244 = vmatprep.subr.mxu0 0.0
      %1245 = vmatpush1.msra.mxu0 0.0
      %1246 = vmatprep.subr.mxu0 0.0
      %1247 = vmatpush1.msra.mxu0 %v1229
      %1248 = vmatprep.subr.mxu0 0.0
      %1249 = vmatpush1.msra.mxu0 %v1228
      %1250 = vmatprep.subr.mxu0 0.0
      %1251 = vmatpush1.msra.mxu0 %v1227
      %1252 = vmatprep.subr.mxu0 0.0
      %1253 = vmatpush1.msra.mxu0 %v1226
      %1254 = vmatprep.subr.mxu0 0.0
      %1255 = vmatpush1.msra.mxu0 %v1225
      %1256 = vmatprep.subr.mxu0 0.0
      %1257 = vmatpush1.msra.mxu0 %v1224
      %1258 = vmatprep.subr.mxu0 0.0
      %1259 = vmatpush1.msra.mxu0 %v1223
      %1260 = vmatprep.subr.mxu0 0.0
      %1261 = vmatpush1.msra.mxu0 %v1222
      %1262 = vmatprep.subr.mxu0 0.0
      %1263 = vmatpush2.msra.mxu0 0.0
      %1264 = vmatprep.subr.mxu0 0.0
      %1265 = vmatpush2.msra.mxu0 0.0
      %1266 = vmatprep.subr.mxu0 0.0
      %1267 = vmatpush2.msra.mxu0 0.0
      %1268 = vmatprep.subr.mxu0 0.0
      %1269 = vmatpush2.msra.mxu0 0.0
      %1270 = vmatprep.subr.mxu0 0.0
      %1271 = vmatpush2.msra.mxu0 0.0
      %1272 = vmatprep.subr.mxu0 0.0
      %1273 = vmatpush2.msra.mxu0 0.0
      %1274 = vmatprep.subr.mxu0 0.0
      %1275 = vmatpush2.msra.mxu0 0.0
      %1276 = vmatprep.subr.mxu0 0.0
      %1277 = vmatpush2.msra.mxu0 0.0
      %1278 = vmatprep.subr.mxu0 0.0
      %1279 = vmatpush2.msra.mxu0 0.0
      %1280 = vmatprep.subr.mxu0 0.0
      %1281 = vmatpush2.msra.mxu0 0.0
      %1282 = vmatprep.subr.mxu0 0.0
      %1283 = vmatpush2.msra.mxu0 0.0
      %1284 = vmatprep.subr.mxu0 0.0
      %1285 = vmatpush2.msra.mxu0 0.0
      %1286 = vmatprep.subr.mxu0 0.0
      %1287 = vmatpush2.msra.mxu0 0.0
      %1288 = vmatprep.subr.mxu0 0.0
      %1289 = vmatpush2.msra.mxu0 0.0
      %1290 = vmatprep.subr.mxu0 0.0
      %1291 = vmatpush2.msra.mxu0 0.0
      %1292 = vmatprep.subr.mxu0 0.0
      %1293 = vmatpush2.msra.mxu0 0.0
      %1294 = vmatprep.mubr.f32.mxu0 0.0
      %1295 = vmatmul.mubr.f32.gmra.mxu0 %v536
      %v1296 = vpop.f32.mrf.mxu0
      %v1297 = vadd.f32 0.0, %v1296
      %v1298 = vpop.f32.mrf.mxu0
      %1299 = vdwg.mxu0
      %v1300 = vsub.f32 %v1297, %v241
      %s1301 = scalar_lea.vmem %s232, 32
      %1302 = vst.msk [vmem:[%s1301] sm:$0x7f] %vm609, %v1300
      %v1303 = vsel %vm1206, inf, %v1130
      %v1304 = vsel %vm1207, inf, %v1131
      %v1305 = vsel %vm1208, inf, %v1132
      %v1306 = vsel %vm1209, inf, %v1133
      %v1307 = vsel %vm1210, inf, %v1134
      %v1308 = vsel %vm1211, inf, %v1135
      %v1309 = vsel %vm1212, inf, %v1136
      %v1310 = vsel %vm1213, inf, %v1137
      %v1311 = vsel %vm441, %v1303, inf
      %v1312 = vsel %vm441, %v1304, inf
      %v1313 = vsel %vm441, %v1305, inf
      %v1314 = vsel %vm441, %v1306, inf
      %v1315 = vsel %vm441, %v1307, inf
      %v1316 = vmin.f32 %v1311, %v1315
      %v1317 = vsel %vm441, %v1308, inf
      %v1318 = vmin.f32 %v1312, %v1317
      %v1319 = vsel %vm441, %v1309, inf
      %v1320 = vmin.f32 %v1313, %v1319
      %v1321 = vsel %vm441, %v1310, inf
      %v1322 = vmin.f32 %v1314, %v1321
      %v1323 = vmin.f32 %v1316, %v1318
      %v1324 = vmin.f32 %v1320, %v1322
      %v1325 = vmin.f32 %v1323, %v1324
      %v1326 = vrot.slane %v1325, 4
      %v1327 = vmin.f32 %v1325, %v1326
      %v1328 = vrot.slane %v1327, 2
      %v1329 = vmin.f32 %v1327, %v1328
      %v1330 = vrot.slane %v1329, 1
      %v1331 = vmin.f32 %v1329, %v1330
      %vm1332 = vcmp.eq.f32.partialorder %v1303, %v1331
      %vm1333 = vcmp.eq.f32.partialorder %v1304, %v1331
      %vm1334 = vcmp.eq.f32.partialorder %v1305, %v1331
      %vm1335 = vcmp.eq.f32.partialorder %v1306, %v1331
      %vm1336 = vcmp.eq.f32.partialorder %v1307, %v1331
      %vm1337 = vcmp.eq.f32.partialorder %v1308, %v1331
      %vm1338 = vcmp.eq.f32.partialorder %v1309, %v1331
      %vm1339 = vcmp.eq.f32.partialorder %v1310, %v1331
      %v1340 = vsel %vm1332, %v433, 64
      %v1341 = vsel %vm1333, %v434, 64
      %v1342 = vsel %vm1334, %v435, 64
      %v1343 = vsel %vm1335, %v436, 64
      %v1344 = vsel %vm1336, %v437, 64
      %v1345 = vsel %vm1337, %v438, 64
      %v1346 = vsel %vm1338, %v439, 64
      %v1347 = vsel %vm1339, %v440, 64
      %v1348 = vsel %vm441, %v1340, 2147483647
      %v1349 = vsel %vm441, %v1341, 2147483647
      %v1350 = vsel %vm441, %v1342, 2147483647
      %v1351 = vsel %vm441, %v1343, 2147483647
      %v1352 = vsel %vm441, %v1344, 2147483647
      %vm1353 = vcmp.lt.s32.totalorder %v1348, %v1352
      %v1354 = vsel %vm1353, %v1348, %v1352
      %v1355 = vsel %vm441, %v1345, 2147483647
      %vm1356 = vcmp.lt.s32.totalorder %v1349, %v1355
      %v1357 = vsel %vm1356, %v1349, %v1355
      %v1358 = vsel %vm441, %v1346, 2147483647
      %vm1359 = vcmp.lt.s32.totalorder %v1350, %v1358
      %v1360 = vsel %vm1359, %v1350, %v1358
      %v1361 = vsel %vm441, %v1347, 2147483647
      %vm1362 = vcmp.lt.s32.totalorder %v1351, %v1361
      %v1363 = vsel %vm1362, %v1351, %v1361
      %vm1364 = vcmp.lt.s32.totalorder %v1354, %v1357
      %v1365 = vsel %vm1364, %v1354, %v1357
      %vm1366 = vcmp.lt.s32.totalorder %v1360, %v1363
      %v1367 = vsel %vm1366, %v1360, %v1363
      %vm1368 = vcmp.lt.s32.totalorder %v1365, %v1367
      %v1369 = vsel %vm1368, %v1365, %v1367
      %v1370 = vrot.slane %v1369, 4
      %vm1371 = vcmp.lt.s32.totalorder %v1369, %v1370
      %v1372 = vsel %vm1371, %v1369, %v1370
      %v1373 = vrot.slane %v1372, 2
      %vm1374 = vcmp.lt.s32.totalorder %v1372, %v1373
      %v1375 = vsel %vm1374, %v1372, %v1373
      %v1376 = vrot.slane %v1375, 1
      %vm1377 = vcmp.lt.s32.totalorder %v1375, %v1376
      %v1378 = vsel %vm1377, %v1375, %v1376
      %vm1379 = vcmp.eq.s32.totalorder %v433, %v1378
      %vm1380 = vcmp.eq.s32.totalorder %v434, %v1378
      %vm1381 = vcmp.eq.s32.totalorder %v435, %v1378
      %vm1382 = vcmp.eq.s32.totalorder %v436, %v1378
      %vm1383 = vcmp.eq.s32.totalorder %v437, %v1378
      %vm1384 = vcmp.eq.s32.totalorder %v438, %v1378
      %vm1385 = vcmp.eq.s32.totalorder %v439, %v1378
      %vm1386 = vcmp.eq.s32.totalorder %v440, %v1378
      %v1387 = vsel %vm1379, 1, 0
      %v1388 = vsel %vm1380, 1, 0
      %v1389 = vsel %vm1381, 1, 0
      %v1390 = vsel %vm1382, 1, 0
      %v1391 = vsel %vm1383, 1, 0
      %v1392 = vsel %vm1384, 1, 0
      %v1393 = vsel %vm1385, 1, 0
      %v1394 = vsel %vm1386, 1, 0
      %v1395 = vcvt.s32.f32 %v1387
      %v1396 = vcvt.s32.f32 %v1388
      %v1397 = vcvt.s32.f32 %v1389
      %v1398 = vcvt.s32.f32 %v1390
      %v1399 = vcvt.s32.f32 %v1391
      %v1400 = vcvt.s32.f32 %v1392
      %v1401 = vcvt.s32.f32 %v1393
      %v1402 = vcvt.s32.f32 %v1394
      %1403 = vmatprep.subr.mxu0 0.0
      %1404 = vmatpush1.msra.mxu0 0.0
      %1405 = vmatprep.subr.mxu0 0.0
      %1406 = vmatpush1.msra.mxu0 0.0
      %1407 = vmatprep.subr.mxu0 0.0
      %1408 = vmatpush1.msra.mxu0 0.0
      %1409 = vmatprep.subr.mxu0 0.0
      %1410 = vmatpush1.msra.mxu0 0.0
      %1411 = vmatprep.subr.mxu0 0.0
      %1412 = vmatpush1.msra.mxu0 0.0
      %1413 = vmatprep.subr.mxu0 0.0
      %1414 = vmatpush1.msra.mxu0 0.0
      %1415 = vmatprep.subr.mxu0 0.0
      %1416 = vmatpush1.msra.mxu0 0.0
      %1417 = vmatprep.subr.mxu0 0.0
      %1418 = vmatpush1.msra.mxu0 0.0
      %1419 = vmatprep.subr.mxu0 0.0
      %1420 = vmatpush1.msra.mxu0 %v1402
      %1421 = vmatprep.subr.mxu0 0.0
      %1422 = vmatpush1.msra.mxu0 %v1401
      %1423 = vmatprep.subr.mxu0 0.0
      %1424 = vmatpush1.msra.mxu0 %v1400
      %1425 = vmatprep.subr.mxu0 0.0
      %1426 = vmatpush1.msra.mxu0 %v1399
      %1427 = vmatprep.subr.mxu0 0.0
      %1428 = vmatpush1.msra.mxu0 %v1398
      %1429 = vmatprep.subr.mxu0 0.0
      %1430 = vmatpush1.msra.mxu0 %v1397
      %1431 = vmatprep.subr.mxu0 0.0
      %1432 = vmatpush1.msra.mxu0 %v1396
      %1433 = vmatprep.subr.mxu0 0.0
      %1434 = vmatpush1.msra.mxu0 %v1395
      %1435 = vmatprep.subr.mxu0 0.0
      %1436 = vmatpush2.msra.mxu0 0.0
      %1437 = vmatprep.subr.mxu0 0.0
      %1438 = vmatpush2.msra.mxu0 0.0
      %1439 = vmatprep.subr.mxu0 0.0
      %1440 = vmatpush2.msra.mxu0 0.0
      %1441 = vmatprep.subr.mxu0 0.0
      %1442 = vmatpush2.msra.mxu0 0.0
      %1443 = vmatprep.subr.mxu0 0.0
      %1444 = vmatpush2.msra.mxu0 0.0
      %1445 = vmatprep.subr.mxu0 0.0
      %1446 = vmatpush2.msra.mxu0 0.0
      %1447 = vmatprep.subr.mxu0 0.0
      %1448 = vmatpush2.msra.mxu0 0.0
      %1449 = vmatprep.subr.mxu0 0.0
      %1450 = vmatpush2.msra.mxu0 0.0
      %1451 = vmatprep.subr.mxu0 0.0
      %1452 = vmatpush2.msra.mxu0 0.0
      %1453 = vmatprep.subr.mxu0 0.0
      %1454 = vmatpush2.msra.mxu0 0.0
      %1455 = vmatprep.subr.mxu0 0.0
      %1456 = vmatpush2.msra.mxu0 0.0
      %1457 = vmatprep.subr.mxu0 0.0
      %1458 = vmatpush2.msra.mxu0 0.0
      %1459 = vmatprep.subr.mxu0 0.0
      %1460 = vmatpush2.msra.mxu0 0.0
      %1461 = vmatprep.subr.mxu0 0.0
      %1462 = vmatpush2.msra.mxu0 0.0
      %1463 = vmatprep.subr.mxu0 0.0
      %1464 = vmatpush2.msra.mxu0 0.0
      %1465 = vmatprep.subr.mxu0 0.0
      %1466 = vmatpush2.msra.mxu0 0.0
      %1467 = vmatprep.mubr.f32.mxu0 0.0
      %1468 = vmatmul.mubr.f32.gmra.mxu0 %v536
      %v1469 = vpop.f32.mrf.mxu0
      %v1470 = vadd.f32 0.0, %v1469
      %v1471 = vpop.f32.mrf.mxu0
      %1472 = vdwg.mxu0
      %v1473 = vsub.f32 %v1470, %v241
      %s1474 = scalar_lea.vmem %s232, 40
      %1475 = vst.msk [vmem:[%s1474] sm:$0x7f] %vm609, %v1473
      %v1476 = vsel %vm1379, inf, %v1303
      %v1477 = vsel %vm1380, inf, %v1304
      %v1478 = vsel %vm1381, inf, %v1305
      %v1479 = vsel %vm1382, inf, %v1306
      %v1480 = vsel %vm1383, inf, %v1307
      %v1481 = vsel %vm1384, inf, %v1308
      %v1482 = vsel %vm1385, inf, %v1309
      %v1483 = vsel %vm1386, inf, %v1310
      %v1484 = vsel %vm441, %v1476, inf
      %v1485 = vsel %vm441, %v1477, inf
      %v1486 = vsel %vm441, %v1478, inf
      %v1487 = vsel %vm441, %v1479, inf
      %v1488 = vsel %vm441, %v1480, inf
      %v1489 = vmin.f32 %v1484, %v1488
      %v1490 = vsel %vm441, %v1481, inf
      %v1491 = vmin.f32 %v1485, %v1490
      %v1492 = vsel %vm441, %v1482, inf
      %v1493 = vmin.f32 %v1486, %v1492
      %v1494 = vsel %vm441, %v1483, inf
      %v1495 = vmin.f32 %v1487, %v1494
      %v1496 = vmin.f32 %v1489, %v1491
      %v1497 = vmin.f32 %v1493, %v1495
      %v1498 = vmin.f32 %v1496, %v1497
      %v1499 = vrot.slane %v1498, 4
      %v1500 = vmin.f32 %v1498, %v1499
      %v1501 = vrot.slane %v1500, 2
      %v1502 = vmin.f32 %v1500, %v1501
      %v1503 = vrot.slane %v1502, 1
      %v1504 = vmin.f32 %v1502, %v1503
      %vm1505 = vcmp.eq.f32.partialorder %v1476, %v1504
      %vm1506 = vcmp.eq.f32.partialorder %v1477, %v1504
      %vm1507 = vcmp.eq.f32.partialorder %v1478, %v1504
      %vm1508 = vcmp.eq.f32.partialorder %v1479, %v1504
      %vm1509 = vcmp.eq.f32.partialorder %v1480, %v1504
      %vm1510 = vcmp.eq.f32.partialorder %v1481, %v1504
      %vm1511 = vcmp.eq.f32.partialorder %v1482, %v1504
      %vm1512 = vcmp.eq.f32.partialorder %v1483, %v1504
      %v1513 = vsel %vm1505, %v433, 64
      %v1514 = vsel %vm1506, %v434, 64
      %v1515 = vsel %vm1507, %v435, 64
      %v1516 = vsel %vm1508, %v436, 64
      %v1517 = vsel %vm1509, %v437, 64
      %v1518 = vsel %vm1510, %v438, 64
      %v1519 = vsel %vm1511, %v439, 64
      %v1520 = vsel %vm1512, %v440, 64
      %v1521 = vsel %vm441, %v1513, 2147483647
      %v1522 = vsel %vm441, %v1514, 2147483647
      %v1523 = vsel %vm441, %v1515, 2147483647
      %v1524 = vsel %vm441, %v1516, 2147483647
      %v1525 = vsel %vm441, %v1517, 2147483647
      %vm1526 = vcmp.lt.s32.totalorder %v1521, %v1525
      %v1527 = vsel %vm1526, %v1521, %v1525
      %v1528 = vsel %vm441, %v1518, 2147483647
      %vm1529 = vcmp.lt.s32.totalorder %v1522, %v1528
      %v1530 = vsel %vm1529, %v1522, %v1528
      %v1531 = vsel %vm441, %v1519, 2147483647
      %vm1532 = vcmp.lt.s32.totalorder %v1523, %v1531
      %v1533 = vsel %vm1532, %v1523, %v1531
      %v1534 = vsel %vm441, %v1520, 2147483647
      %vm1535 = vcmp.lt.s32.totalorder %v1524, %v1534
      %v1536 = vsel %vm1535, %v1524, %v1534
      %vm1537 = vcmp.lt.s32.totalorder %v1527, %v1530
      %v1538 = vsel %vm1537, %v1527, %v1530
      %vm1539 = vcmp.lt.s32.totalorder %v1533, %v1536
      %v1540 = vsel %vm1539, %v1533, %v1536
      %vm1541 = vcmp.lt.s32.totalorder %v1538, %v1540
      %v1542 = vsel %vm1541, %v1538, %v1540
      %v1543 = vrot.slane %v1542, 4
      %vm1544 = vcmp.lt.s32.totalorder %v1542, %v1543
      %v1545 = vsel %vm1544, %v1542, %v1543
      %v1546 = vrot.slane %v1545, 2
      %vm1547 = vcmp.lt.s32.totalorder %v1545, %v1546
      %v1548 = vsel %vm1547, %v1545, %v1546
      %v1549 = vrot.slane %v1548, 1
      %vm1550 = vcmp.lt.s32.totalorder %v1548, %v1549
      %v1551 = vsel %vm1550, %v1548, %v1549
      %vm1552 = vcmp.eq.s32.totalorder %v433, %v1551
      %vm1553 = vcmp.eq.s32.totalorder %v434, %v1551
      %vm1554 = vcmp.eq.s32.totalorder %v435, %v1551
      %vm1555 = vcmp.eq.s32.totalorder %v436, %v1551
      %vm1556 = vcmp.eq.s32.totalorder %v437, %v1551
      %vm1557 = vcmp.eq.s32.totalorder %v438, %v1551
      %vm1558 = vcmp.eq.s32.totalorder %v439, %v1551
      %vm1559 = vcmp.eq.s32.totalorder %v440, %v1551
      %v1560 = vsel %vm1552, 1, 0
      %v1561 = vsel %vm1553, 1, 0
      %v1562 = vsel %vm1554, 1, 0
      %v1563 = vsel %vm1555, 1, 0
      %v1564 = vsel %vm1556, 1, 0
      %v1565 = vsel %vm1557, 1, 0
      %v1566 = vsel %vm1558, 1, 0
      %v1567 = vsel %vm1559, 1, 0
      %v1568 = vcvt.s32.f32 %v1560
      %v1569 = vcvt.s32.f32 %v1561
      %v1570 = vcvt.s32.f32 %v1562
      %v1571 = vcvt.s32.f32 %v1563
      %v1572 = vcvt.s32.f32 %v1564
      %v1573 = vcvt.s32.f32 %v1565
      %v1574 = vcvt.s32.f32 %v1566
      %v1575 = vcvt.s32.f32 %v1567
      %1576 = vmatprep.subr.mxu0 0.0
      %1577 = vmatpush1.msra.mxu0 0.0
      %1578 = vmatprep.subr.mxu0 0.0
      %1579 = vmatpush1.msra.mxu0 0.0
      %1580 = vmatprep.subr.mxu0 0.0
      %1581 = vmatpush1.msra.mxu0 0.0
      %1582 = vmatprep.subr.mxu0 0.0
      %1583 = vmatpush1.msra.mxu0 0.0
      %1584 = vmatprep.subr.mxu0 0.0
      %1585 = vmatpush1.msra.mxu0 0.0
      %1586 = vmatprep.subr.mxu0 0.0
      %1587 = vmatpush1.msra.mxu0 0.0
      %1588 = vmatprep.subr.mxu0 0.0
      %1589 = vmatpush1.msra.mxu0 0.0
      %1590 = vmatprep.subr.mxu0 0.0
      %1591 = vmatpush1.msra.mxu0 0.0
      %1592 = vmatprep.subr.mxu0 0.0
      %1593 = vmatpush1.msra.mxu0 %v1575
      %1594 = vmatprep.subr.mxu0 0.0
      %1595 = vmatpush1.msra.mxu0 %v1574
      %1596 = vmatprep.subr.mxu0 0.0
      %1597 = vmatpush1.msra.mxu0 %v1573
      %1598 = vmatprep.subr.mxu0 0.0
      %1599 = vmatpush1.msra.mxu0 %v1572
      %1600 = vmatprep.subr.mxu0 0.0
      %1601 = vmatpush1.msra.mxu0 %v1571
      %1602 = vmatprep.subr.mxu0 0.0
      %1603 = vmatpush1.msra.mxu0 %v1570
      %1604 = vmatprep.subr.mxu0 0.0
      %1605 = vmatpush1.msra.mxu0 %v1569
      %1606 = vmatprep.subr.mxu0 0.0
      %1607 = vmatpush1.msra.mxu0 %v1568
      %1608 = vmatprep.subr.mxu0 0.0
      %1609 = vmatpush2.msra.mxu0 0.0
      %1610 = vmatprep.subr.mxu0 0.0
      %1611 = vmatpush2.msra.mxu0 0.0
      %1612 = vmatprep.subr.mxu0 0.0
      %1613 = vmatpush2.msra.mxu0 0.0
      %1614 = vmatprep.subr.mxu0 0.0
      %1615 = vmatpush2.msra.mxu0 0.0
      %1616 = vmatprep.subr.mxu0 0.0
      %1617 = vmatpush2.msra.mxu0 0.0
      %1618 = vmatprep.subr.mxu0 0.0
      %1619 = vmatpush2.msra.mxu0 0.0
      %1620 = vmatprep.subr.mxu0 0.0
      %1621 = vmatpush2.msra.mxu0 0.0
      %1622 = vmatprep.subr.mxu0 0.0
      %1623 = vmatpush2.msra.mxu0 0.0
      %1624 = vmatprep.subr.mxu0 0.0
      %1625 = vmatpush2.msra.mxu0 0.0
      %1626 = vmatprep.subr.mxu0 0.0
      %1627 = vmatpush2.msra.mxu0 0.0
      %1628 = vmatprep.subr.mxu0 0.0
      %1629 = vmatpush2.msra.mxu0 0.0
      %1630 = vmatprep.subr.mxu0 0.0
      %1631 = vmatpush2.msra.mxu0 0.0
      %1632 = vmatprep.subr.mxu0 0.0
      %1633 = vmatpush2.msra.mxu0 0.0
      %1634 = vmatprep.subr.mxu0 0.0
      %1635 = vmatpush2.msra.mxu0 0.0
      %1636 = vmatprep.subr.mxu0 0.0
      %1637 = vmatpush2.msra.mxu0 0.0
      %1638 = vmatprep.subr.mxu0 0.0
      %1639 = vmatpush2.msra.mxu0 0.0
      %1640 = vmatprep.mubr.f32.mxu0 0.0
      %1641 = vmatmul.mubr.f32.gmra.mxu0 %v536
      %v1642 = vpop.f32.mrf.mxu0
      %v1643 = vadd.f32 0.0, %v1642
      %v1644 = vpop.f32.mrf.mxu0
      %1645 = vdwg.mxu0
      %v1646 = vsub.f32 %v1643, %v241
      %s1647 = scalar_lea.vmem %s232, 48
      %1648 = vst.msk [vmem:[%s1647] sm:$0x7f] %vm609, %v1646
      %v1649 = vsel %vm1552, inf, %v1476
      %v1650 = vsel %vm1553, inf, %v1477
      %v1651 = vsel %vm1554, inf, %v1478
      %v1652 = vsel %vm1555, inf, %v1479
      %v1653 = vsel %vm1556, inf, %v1480
      %v1654 = vsel %vm1557, inf, %v1481
      %v1655 = vsel %vm1558, inf, %v1482
      %v1656 = vsel %vm1559, inf, %v1483
      %v1657 = vsel %vm441, %v1649, inf
      %v1658 = vsel %vm441, %v1650, inf
      %v1659 = vsel %vm441, %v1651, inf
      %v1660 = vsel %vm441, %v1652, inf
      %v1661 = vsel %vm441, %v1653, inf
      %v1662 = vmin.f32 %v1657, %v1661
      %v1663 = vsel %vm441, %v1654, inf
      %v1664 = vmin.f32 %v1658, %v1663
      %v1665 = vsel %vm441, %v1655, inf
      %v1666 = vmin.f32 %v1659, %v1665
      %v1667 = vsel %vm441, %v1656, inf
      %v1668 = vmin.f32 %v1660, %v1667
      %v1669 = vmin.f32 %v1662, %v1664
      %v1670 = vmin.f32 %v1666, %v1668
      %v1671 = vmin.f32 %v1669, %v1670
      %v1672 = vrot.slane %v1671, 4
      %v1673 = vmin.f32 %v1671, %v1672
      %v1674 = vrot.slane %v1673, 2
      %v1675 = vmin.f32 %v1673, %v1674
      %v1676 = vrot.slane %v1675, 1
      %v1677 = vmin.f32 %v1675, %v1676
      %vm1678 = vcmp.eq.f32.partialorder %v1649, %v1677
      %vm1679 = vcmp.eq.f32.partialorder %v1650, %v1677
      %vm1680 = vcmp.eq.f32.partialorder %v1651, %v1677
      %vm1681 = vcmp.eq.f32.partialorder %v1652, %v1677
      %vm1682 = vcmp.eq.f32.partialorder %v1653, %v1677
      %vm1683 = vcmp.eq.f32.partialorder %v1654, %v1677
      %vm1684 = vcmp.eq.f32.partialorder %v1655, %v1677
      %vm1685 = vcmp.eq.f32.partialorder %v1656, %v1677
      %v1686 = vsel %vm1678, %v433, 64
      %v1687 = vsel %vm1679, %v434, 64
      %v1688 = vsel %vm1680, %v435, 64
      %v1689 = vsel %vm1681, %v436, 64
      %v1690 = vsel %vm1682, %v437, 64
      %v1691 = vsel %vm1683, %v438, 64
      %v1692 = vsel %vm1684, %v439, 64
      %v1693 = vsel %vm1685, %v440, 64
      %v1694 = vsel %vm441, %v1686, 2147483647
      %v1695 = vsel %vm441, %v1687, 2147483647
      %v1696 = vsel %vm441, %v1688, 2147483647
      %v1697 = vsel %vm441, %v1689, 2147483647
      %v1698 = vsel %vm441, %v1690, 2147483647
      %vm1699 = vcmp.lt.s32.totalorder %v1694, %v1698
      %v1700 = vsel %vm1699, %v1694, %v1698
      %v1701 = vsel %vm441, %v1691, 2147483647
      %vm1702 = vcmp.lt.s32.totalorder %v1695, %v1701
      %v1703 = vsel %vm1702, %v1695, %v1701
      %v1704 = vsel %vm441, %v1692, 2147483647
      %vm1705 = vcmp.lt.s32.totalorder %v1696, %v1704
      %v1706 = vsel %vm1705, %v1696, %v1704
      %v1707 = vsel %vm441, %v1693, 2147483647
      %vm1708 = vcmp.lt.s32.totalorder %v1697, %v1707
      %v1709 = vsel %vm1708, %v1697, %v1707
      %vm1710 = vcmp.lt.s32.totalorder %v1700, %v1703
      %v1711 = vsel %vm1710, %v1700, %v1703
      %vm1712 = vcmp.lt.s32.totalorder %v1706, %v1709
      %v1713 = vsel %vm1712, %v1706, %v1709
      %vm1714 = vcmp.lt.s32.totalorder %v1711, %v1713
      %v1715 = vsel %vm1714, %v1711, %v1713
      %v1716 = vrot.slane %v1715, 4
      %vm1717 = vcmp.lt.s32.totalorder %v1715, %v1716
      %v1718 = vsel %vm1717, %v1715, %v1716
      %v1719 = vrot.slane %v1718, 2
      %vm1720 = vcmp.lt.s32.totalorder %v1718, %v1719
      %v1721 = vsel %vm1720, %v1718, %v1719
      %v1722 = vrot.slane %v1721, 1
      %vm1723 = vcmp.lt.s32.totalorder %v1721, %v1722
      %v1724 = vsel %vm1723, %v1721, %v1722
      %vm1725 = vcmp.eq.s32.totalorder %v433, %v1724
      %vm1726 = vcmp.eq.s32.totalorder %v434, %v1724
      %vm1727 = vcmp.eq.s32.totalorder %v435, %v1724
      %vm1728 = vcmp.eq.s32.totalorder %v436, %v1724
      %vm1729 = vcmp.eq.s32.totalorder %v437, %v1724
      %vm1730 = vcmp.eq.s32.totalorder %v438, %v1724
      %vm1731 = vcmp.eq.s32.totalorder %v439, %v1724
      %vm1732 = vcmp.eq.s32.totalorder %v440, %v1724
      %v1733 = vsel %vm1725, 1, 0
      %v1734 = vsel %vm1726, 1, 0
      %v1735 = vsel %vm1727, 1, 0
      %v1736 = vsel %vm1728, 1, 0
      %v1737 = vsel %vm1729, 1, 0
      %v1738 = vsel %vm1730, 1, 0
      %v1739 = vsel %vm1731, 1, 0
      %v1740 = vsel %vm1732, 1, 0
      %v1741 = vcvt.s32.f32 %v1733
      %v1742 = vcvt.s32.f32 %v1734
      %v1743 = vcvt.s32.f32 %v1735
      %v1744 = vcvt.s32.f32 %v1736
      %v1745 = vcvt.s32.f32 %v1737
      %v1746 = vcvt.s32.f32 %v1738
      %v1747 = vcvt.s32.f32 %v1739
      %v1748 = vcvt.s32.f32 %v1740
      %1749 = vmatprep.subr.mxu0 0.0
      %1750 = vmatpush1.msra.mxu0 0.0
      %1751 = vmatprep.subr.mxu0 0.0
      %1752 = vmatpush1.msra.mxu0 0.0
      %1753 = vmatprep.subr.mxu0 0.0
      %1754 = vmatpush1.msra.mxu0 0.0
      %1755 = vmatprep.subr.mxu0 0.0
      %1756 = vmatpush1.msra.mxu0 0.0
      %1757 = vmatprep.subr.mxu0 0.0
      %1758 = vmatpush1.msra.mxu0 0.0
      %1759 = vmatprep.subr.mxu0 0.0
      %1760 = vmatpush1.msra.mxu0 0.0
      %1761 = vmatprep.subr.mxu0 0.0
      %1762 = vmatpush1.msra.mxu0 0.0
      %1763 = vmatprep.subr.mxu0 0.0
      %1764 = vmatpush1.msra.mxu0 0.0
      %1765 = vmatprep.subr.mxu0 0.0
      %1766 = vmatpush1.msra.mxu0 %v1748
      %1767 = vmatprep.subr.mxu0 0.0
      %1768 = vmatpush1.msra.mxu0 %v1747
      %1769 = vmatprep.subr.mxu0 0.0
      %1770 = vmatpush1.msra.mxu0 %v1746
      %1771 = vmatprep.subr.mxu0 0.0
      %1772 = vmatpush1.msra.mxu0 %v1745
      %1773 = vmatprep.subr.mxu0 0.0
      %1774 = vmatpush1.msra.mxu0 %v1744
      %1775 = vmatprep.subr.mxu0 0.0
      %1776 = vmatpush1.msra.mxu0 %v1743
      %1777 = vmatprep.subr.mxu0 0.0
      %1778 = vmatpush1.msra.mxu0 %v1742
      %1779 = vmatprep.subr.mxu0 0.0
      %1780 = vmatpush1.msra.mxu0 %v1741
      %1781 = vmatprep.subr.mxu0 0.0
      %1782 = vmatpush2.msra.mxu0 0.0
      %1783 = vmatprep.subr.mxu0 0.0
      %1784 = vmatpush2.msra.mxu0 0.0
      %1785 = vmatprep.subr.mxu0 0.0
      %1786 = vmatpush2.msra.mxu0 0.0
      %1787 = vmatprep.subr.mxu0 0.0
      %1788 = vmatpush2.msra.mxu0 0.0
      %1789 = vmatprep.subr.mxu0 0.0
      %1790 = vmatpush2.msra.mxu0 0.0
      %1791 = vmatprep.subr.mxu0 0.0
      %1792 = vmatpush2.msra.mxu0 0.0
      %1793 = vmatprep.subr.mxu0 0.0
      %1794 = vmatpush2.msra.mxu0 0.0
      %1795 = vmatprep.subr.mxu0 0.0
      %1796 = vmatpush2.msra.mxu0 0.0
      %1797 = vmatprep.subr.mxu0 0.0
      %1798 = vmatpush2.msra.mxu0 0.0
      %1799 = vmatprep.subr.mxu0 0.0
      %1800 = vmatpush2.msra.mxu0 0.0
      %1801 = vmatprep.subr.mxu0 0.0
      %1802 = vmatpush2.msra.mxu0 0.0
      %1803 = vmatprep.subr.mxu0 0.0
      %1804 = vmatpush2.msra.mxu0 0.0
      %1805 = vmatprep.subr.mxu0 0.0
      %1806 = vmatpush2.msra.mxu0 0.0
      %1807 = vmatprep.subr.mxu0 0.0
      %1808 = vmatpush2.msra.mxu0 0.0
      %1809 = vmatprep.subr.mxu0 0.0
      %1810 = vmatpush2.msra.mxu0 0.0
      %1811 = vmatprep.subr.mxu0 0.0
      %1812 = vmatpush2.msra.mxu0 0.0
      %1813 = vmatprep.mubr.f32.mxu0 0.0
      %1814 = vmatmul.mubr.f32.gmra.mxu0 %v536
      %v1815 = vpop.f32.mrf.mxu0
      %v1816 = vadd.f32 0.0, %v1815
      %v1817 = vpop.f32.mrf.mxu0
      %1818 = vdwg.mxu0
      %v1819 = vsub.f32 %v1816, %v241
      %s1820 = scalar_lea.vmem %s232, 56
      %1821 = vst.msk [vmem:[%s1820] sm:$0x7f] %vm609, %v1819
      %p1822 = scmp.lt.s32.totalorder %s18, 1
      %s1823 = scalar_select %p1822, %s18, 1
      %p1824 = scmp.lt.s32.totalorder %s19, 0
      %s1825 = scalar_select %p1824, %s19, 0
      %s1826 = smul.addr %s1823, 8
      %s1827 = sadd.s32 %s1825, %s1826
      %s1828 = smul.addr %s1827, 8
      %s1829 = scalar_lea.vmem %s3, %s1828
      // Predicated region
      $region33: #{tpu_custom_call.1} parent=31 // pred_check
        %p1830 = pneg %p126
      $region34: #{tpu_custom_call.1} parent=31 // pred_check_branch
        %1832 = sbr.rel (%p1830) target = $region36
      $region35: #{tpu_custom_call.1} parent=31 // pred_region
        _
      $region36: #{tpu_custom_call.1} parent=31 // pred_fallthru
        _
    $region32: #{tpu_custom_call.1} parent=5 // pred_fallthru
      _
    %p1833 = scmp.le.s32.totalorder 2, %s9
    // Predicated region
    $region37: #{tpu_custom_call.1} parent=5 // pred_check
      %p1834 = pneg %p1833
    $region38: #{tpu_custom_call.1} parent=5 // pred_check_branch
      %1836 = sbr.rel (%p1834) target = $region40
    $region39: #{tpu_custom_call.1} parent=5 // pred_region
      %s1837 = ssub.s32 %s9, 2
      // Predicated region
      $region41: #{tpu_custom_call.1} parent=39 // pred_check
        %p1838 = pneg %p132
      $region42: #{tpu_custom_call.1} parent=39 // pred_check_branch
        %1840 = sbr.rel (%p1838) target = $region44
      $region43: #{tpu_custom_call.1} parent=39 // pred_region
        %p1841 = scmp.lt.s32.totalorder %s20, 1
        %s1842 = scalar_select %p1841, %s20, 1
        %p1843 = scmp.lt.s32.totalorder %s21, 0
        %s1844 = scalar_select %p1843, %s21, 0
        %s1845 = smul.addr %s1842, 8
        %s1846 = sadd.s32 %s1844, %s1845
        %s1847 = smul.addr %s1846, 8
        %s1848 = scalar_lea.vmem %s3, %s1847
      $region44: #{tpu_custom_call.1} parent=39 // pred_fallthru
        _
    $region40: #{tpu_custom_call.1} parent=5 // pred_fallthru
      _
  $region6: #{tpu_custom_call.1} parent=0 // loop_footer
    %s13 = sadd.s32 1, %s9
  $region7: #{tpu_custom_call.1} parent=0 // loop_footer_branch
    %8 = sbr.rel target = $region3
  $region8: #{tpu_custom_call.1} parent=0 // loop_exit
    _

</llo_original>
